<compile_context>
chip_gen: v5e
topology: v5e:2x2
jax: 0.10.0
libtpu: 0.0.40
codegen_flags: <defaults>
</compile_context>

<pallas_src>
import math

import jax
import jax.numpy as jnp
from jax import lax
from jax.experimental import pallas as pl
from jax.experimental.pallas import tpu as pltpu


# ---------------------------------------------------------------- helpers ----
def _layernorm(x, gamma, beta, eps=1e-6):
    # torch.nn.LayerNorm(hidden_dim, eps=1e-6): biased variance over last dim.
    mean = jnp.mean(x, axis=-1, keepdims=True)
    xc = x - mean
    var = jnp.mean(xc * xc, axis=-1, keepdims=True)
    return xc * lax.rsqrt(var + eps) * gamma + beta


def _gelu_exact(x):
    # nn.GELU() default (exact, erf-based).
    return 0.5 * x * (1.0 + lax.erf(x * 0.7071067811865476))


# ----------------------------------------------------------- fused forward ----
def conv_encoder_forward(x, pos_embedding, layer_params, ln_g, ln_b, num_heads,
                         *, batch_block=None, mm_dtype=jnp.bfloat16):
    """Fused ConvEncoder forward: pos-embed + L ConvEncoderBlocks + final LN.

    mm_dtype: dtype fed to the MXU (accumulation is always f32).  bf16 is the
    recommended default (2x MXU rate and half the weight DMA/VMEM on
    v6e/v7x, near-mandatory on v5e); pass jnp.float32 for bit-closer parity.
    """
    B, S, H = x.shape
    L = len(layer_params)
    M = layer_params[0]["w1t"].shape[1]
    nh = num_heads
    assert H % nh == 0
    hd = H // nh

    BB = B if batch_block is None else batch_block       # batch rows per tile
    assert B % BB == 0
    N = BB * S                                            # rows per batch tile
    R, W = 13, max(3 * H, M)                              # packed-params shape
    scale = 1.0 / math.sqrt(hd)
    f32 = jnp.float32

    # ---- host-side parameter packing / per-layer stacking (leading L axis) --
    def _pad_row(v):
        v = jnp.reshape(jnp.asarray(v, f32), (-1,))
        return jnp.pad(v, (0, W - v.shape[0]))

    # fold the attention 1/sqrt(hd) scale into the Q third of in_proj (W and b)
    qkv_scale = jnp.concatenate([jnp.full((H,), scale, f32),
                                 jnp.ones((2 * H,), f32)])

    small = jnp.stack([
        jnp.stack([_pad_row(p["ln1_g"]), _pad_row(p["ln1_b"]),
                   _pad_row(p["dw_w"][0]), _pad_row(p["dw_w"][1]),
                   _pad_row(p["dw_w"][2]), _pad_row(p["dw_b"]),
                   _pad_row(p["pw_b"]),
                   _pad_row(jnp.reshape(jnp.asarray(p["in_b"], f32), (-1,))
                            * qkv_scale),
                   _pad_row(p["out_b"]), _pad_row(p["ln2_g"]),
                   _pad_row(p["ln2_b"]), _pad_row(p["b1"]), _pad_row(p["b2"])])
        for p in layer_params])                                    # (L, 13, W)

    # matmul weights: stacked over layers, pre-cast to mm_dtype on the host
    pw_wt = jnp.stack([p["pw_wt"] for p in layer_params]).astype(mm_dtype)
    in_wt = jnp.stack([jnp.asarray(p["in_wt"], f32) * qkv_scale[None, :]
                       for p in layer_params]).astype(mm_dtype)    # (L, H, 3H)
    # out_proj rows grouped per head -> clean leading-dim indexing in-kernel
    out_wt = jnp.stack([jnp.asarray(p["out_wt"], f32).reshape(nh, hd, H)
                        for p in layer_params]).astype(mm_dtype)   # (L,nh,hd,H)
    w1t = jnp.stack([p["w1t"] for p in layer_params]).astype(mm_dtype)
    w2t = jnp.stack([p["w2t"] for p in layer_params]).astype(mm_dtype)
    fin_ln = jnp.concatenate([jnp.reshape(ln_g, (1, H)),
                              jnp.reshape(ln_b, (1, H))], axis=0).astype(f32)

    def kernel(x_ref, pos_ref, sp_ref, pw_ref, inw_ref, ow_ref,
               w1_ref, w2_ref, fin_ref, o_ref, res_ref):
        l = pl.program_id(1)

        # layer 0: fold "input + pos_embedding" (outer Dropout = identity)
        @pl.when(l == 0)
        def _init():
            res_ref[...] = (x_ref[...].astype(f32)
                            + pos_ref[...].astype(f32)).reshape(N, H)

        # f32 residual stream for this batch tile (persistent VMEM scratch),
        # flattened so every matmul sees all BB*S rows at once.
        x_res = res_ref[...]                                      # (N, H) f32

        sp = sp_ref[0]                                   # (13, W) packed params
        ln1_g, ln1_b = sp[0:1, :H], sp[1:2, :H]
        dw_prev, dw_cur, dw_next = sp[2:3, :H], sp[3:4, :H], sp[4:5, :H]
        dw_b, pw_b = sp[5:6, :H], sp[6:7, :H]
        in_b, out_b = sp[7:8, :3 * H], sp[8:9, :H]
        ln2_g, ln2_b = sp[9:10, :H], sp[10:11, :H]
        b1, b2 = sp[11:12, :M], sp[12:13, :H]

        # ---- ln_1 -----------------------------------------------------------
        h = _layernorm(x_res, ln1_g, ln1_b)

        # ---- depthwise Conv1d(H, H, k=3, pad=1, groups=H) along S ------------
        # Shifted rows via XLU roll on the flat slab; first/last row of each
        # sequence is masked so adjacent batch elements never leak.  The only
        # remaining per-layer iota is this tiny (N,1) one (the big attention
        # masks of the previous revision are gone).
        pos_s = lax.broadcasted_iota(jnp.int32, (N, 1), 0) % S
        h_prev = jnp.where(pos_s == 0, 0.0, pltpu.roll(h, 1, 0))
        h_next = jnp.where(pos_s == S - 1, 0.0, pltpu.roll(h, N - 1, 0))
        h = h_prev * dw_prev + h * dw_cur + h_next * dw_next + dw_b

        # ---- pointwise Conv1d(k=1) == per-position linear ---------------------
        h = jnp.dot(h.astype(mm_dtype), pw_ref[0],
                    preferred_element_type=f32) + pw_b

        # ---- multi-head self-attention (batch_first, eval, no mask) ----------
        qkv = jnp.dot(h.astype(mm_dtype), inw_ref[0],
                      preferred_element_type=f32) + in_b           # (N, 3H)
        qkv_mm = qkv.astype(mm_dtype)                              # cast once

        # Per-head batched matmuls on (BB, S, hd) slices: no redundant MXU
        # FLOPs, no concat/mask slabs.  The out-projection is applied per head
        # from its (hd, H) row block and accumulated, so no lane concat of the
        # per-head contexts is needed either.
        attn = out_b                                               # (1, H) f32
        for hh in range(nh):
            c0 = hh * hd
            qh = qkv_mm[:, c0:c0 + hd].reshape(BB, S, hd)          # pre-scaled
            kh = qkv_mm[:, H + c0:H + c0 + hd].reshape(BB, S, hd)
            vh = qkv_mm[:, 2 * H + c0:2 * H + c0 + hd].reshape(BB, S, hd)
            s = jnp.einsum("bqd,bkd->bqk", qh, kh,
                           preferred_element_type=f32)             # (BB, S, S)
            s = s - jnp.max(s, axis=-1, keepdims=True)
            p = jnp.exp(s)
            p = p * pl.reciprocal(jnp.sum(p, axis=-1, keepdims=True),
                                  approx=True)
            ctx = jnp.einsum("bqk,bkd->bqd", p.astype(mm_dtype), vh,
                             preferred_element_type=f32)           # (BB, S, hd)
            attn = attn + jnp.dot(ctx.reshape(N, hd).astype(mm_dtype),
                                  ow_ref[0, hh],
                                  preferred_element_type=f32)      # (N, H)

        # dropout = identity (eval); residual with the ORIGINAL block input,
        # matching torch: x = dropout(attn(conv(ln_1(input)))) + input
        x_mid = attn + x_res

        # ---- MLP: ln_2 -> Linear -> GELU(exact) -> Linear -> residual ---------
        y = _layernorm(x_mid, ln2_g, ln2_b)
        y = jnp.dot(y.astype(mm_dtype), w1_ref[0],
                    preferred_element_type=f32) + b1
        y = _gelu_exact(y)
        y = jnp.dot(y.astype(mm_dtype), w2_ref[0],
                    preferred_element_type=f32) + b2
        x_out = x_mid + y                                           # (N, H)

        @pl.when(l < L - 1)
        def _store():
            res_ref[...] = x_out

        # last layer: fuse the encoder's final LayerNorm, then the ONLY
        # HBM writeback of the activation for this batch tile.
        @pl.when(l == L - 1)
        def _store_final():
            z = _layernorm(x_out, fin_ref[0:1, :], fin_ref[1:2, :])
            o_ref[...] = z.reshape(BB, S, H).astype(o_ref.dtype)

    return pl.pallas_call(
        kernel,
        out_shape=jax.ShapeDtypeStruct((B, S, H), x.dtype),
        grid=(B // BB, L),
        in_specs=[
            pl.BlockSpec((BB, S, H), lambda bt, l: (bt, 0, 0)),      # x
            pl.BlockSpec((1, S, H), lambda bt, l: (0, 0, 0)),        # pos_embed
            pl.BlockSpec((1, R, W), lambda bt, l: (l, 0, 0)),        # packed small
            pl.BlockSpec((1, H, H), lambda bt, l: (l, 0, 0)),        # pointwise W^T
            pl.BlockSpec((1, H, 3 * H), lambda bt, l: (l, 0, 0)),    # in_proj  W^T
            pl.BlockSpec((1, nh, hd, H), lambda bt, l: (l, 0, 0, 0)),  # out_proj
            pl.BlockSpec((1, H, M), lambda bt, l: (l, 0, 0)),        # mlp W1^T
            pl.BlockSpec((1, M, H), lambda bt, l: (l, 0, 0)),        # mlp W2^T
            pl.BlockSpec((2, H), lambda bt, l: (0, 0)),              # final LN g,b
        ],
        out_specs=pl.BlockSpec((BB, S, H), lambda bt, l: (bt, 0, 0)),
        scratch_shapes=[pltpu.VMEM((N, H), f32)],                   # residual
        compiler_params=pltpu.CompilerParams(
            dimension_semantics=("parallel", "arbitrary"),
            # above the 16/32 MiB scoped defaults, below v7x's 64 MiB physical
            vmem_limit_bytes=48 * 1024 * 1024),
    )(x, pos_embedding, small, pw_wt, in_wt, out_wt, w1t, w2t, fin_ln)


# ------------------------------------------------------- pure-JAX reference ----
def _reference_forward(x, pos, layer_params, ln_g, ln_b, nh):
    """Straightforward JAX transcription of the torch ConvEncoder (eval mode)."""
    def ln(v, g, b, eps=1e-6):
        m = v.mean(-1, keepdims=True)
        c = v - m
        return (c / jnp.sqrt((c * c).mean(-1, keepdims=True) + eps)
                * jnp.reshape(g, (-1,)) + jnp.reshape(b, (-1,)))

    B, S, H = x.shape
    hd = H // nh
    h = x + pos
    for p in layer_params:
        inp = h
        y = ln(inp, p["ln1_g"], p["ln1_b"])
        yp = jnp.pad(y, ((0, 0), (1, 1), (0, 0)))
        w = p["dw_w"]                                     # taps [s-1, s, s+1]
        y = (yp[:, :-2, :] * w[0] + yp[:, 1:-1, :] * w[1] + yp[:, 2:, :] * w[2]
             + jnp.reshape(p["dw_b"], (-1,)))
        y = y @ p["pw_wt"] + jnp.reshape(p["pw_b"], (-1,))
        qkv = y @ p["in_wt"] + jnp.reshape(p["in_b"], (-1,))
        q, k, v = qkv[..., :H], qkv[..., H:2 * H], qkv[..., 2 * H:]
        q = q.reshape(B, S, nh, hd).transpose(0, 2, 1, 3)
        k = k.reshape(B, S, nh, hd).transpose(0, 2, 1, 3)
        v = v.reshape(B, S, nh, hd).transpose(0, 2, 1, 3)
        s = jnp.einsum("bhqd,bhkd->bhqk", q, k) / math.sqrt(hd)
        a = jax.nn.softmax(s, axis=-1)
        o = jnp.einsum("bhqk,bhkd->bhqd", a, v)
        o = o.transpose(0, 2, 1, 3).reshape(B, S, H)
        o = o @ p["out_wt"] + jnp.reshape(p["out_b"], (-1,))
        xm = o + inp
        z = ln(xm, p["ln2_g"], p["ln2_b"])
        z = z @ p["w1t"] + jnp.reshape(p["b1"], (-1,))
        z = 0.5 * z * (1.0 + lax.erf(z * 0.7071067811865476))
        z = z @ p["w2t"] + jnp.reshape(p["b2"], (-1,))
        h = xm + z
    return ln(h, ln_g, ln_b)


# ----------------------------------------------------------------- params ----
def init_layer_params(key, H, M):
    """Deterministic synthetic parameters, shapes matching the torch module.

    torch shapes -> stored layout here:
      depthwise_conv.weight (H,1,3) -> dw_w  (3,H)  taps ordered [s-1, s, s+1]
      pointwise_conv.weight (H,H,1) -> pw_wt (H,H)   (pre-transposed, x @ W^T)
      attn.in_proj_weight   (3H,H)  -> in_wt (H,3H)
      attn.out_proj.weight  (H,H)   -> out_wt(H,H)
      mlp[0].weight         (M,H)   -> w1t   (H,M)
      mlp[3].weight         (H,M)   -> w2t   (M,H)
      biases stored as (1, N) rows.
    """
    ks = jax.random.split(key, 12)
    s = 0.05
    f32 = jnp.float32
    return dict(
        ln1_g=jnp.ones((1, H), f32), ln1_b=jnp.zeros((1, H), f32),
        dw_w=jax.random.normal(ks[0], (3, H), f32) * s,
        dw_b=jax.random.normal(ks[1], (1, H), f32) * s,
        pw_wt=jax.random.normal(ks[2], (H, H), f32) * s,
        pw_b=jax.random.normal(ks[3], (1, H), f32) * s,
        in_wt=jax.random.normal(ks[4], (H, 3 * H), f32) * s,
        in_b=jax.random.normal(ks[5], (1, 3 * H), f32) * s,
        out_wt=jax.random.normal(ks[6], (H, H), f32) * s,
        out_b=jax.random.normal(ks[7], (1, H), f32) * s,
        ln2_g=jnp.ones((1, H), f32), ln2_b=jnp.zeros((1, H), f32),
        w1t=jax.random.normal(ks[8], (H, M), f32) * s,
        b1=jax.random.normal(ks[9], (1, M), f32) * 1e-6,
        w2t=jax.random.normal(ks[10], (M, H), f32) * s,
        b2=jax.random.normal(ks[11], (1, H), f32) * 1e-6,
    )


# ------------------------------------------------------------------- main ----
if __name__ == "__main__":
    # ConvEncoder(seq_length=8, num_layers=2, num_heads=4, hidden_dim=32,
    #             mlp_dim=64, dropout=0.0, attention_dropout=0.0)
    B, S, H, M = 2, 8, 32, 64
    num_heads, num_layers = 4, 2

    key = jax.random.PRNGKey(0)
    kx, kp, *kls = jax.random.split(key, 2 + num_layers)

    x = jax.random.normal(kx, (B, S, H), jnp.float32)             # (B, S, H)
    pos_embedding = jax.random.normal(kp, (1, S, H), jnp.float32) * 0.02
    layer_params = [init_layer_params(k, H, M) for k in kls]
    ln_g = jnp.ones((1, H), jnp.float32)
    ln_b = jnp.zeros((1, H), jnp.float32)

    out = conv_encoder_forward(x, pos_embedding, layer_params, ln_g, ln_b,
                               num_heads)                          # bf16 MXU
    out = jax.block_until_ready(out)

    assert out.shape == (B, S, H), out.shape
    assert bool(jnp.all(jnp.isfinite(out)))

    # Numeric check against a pure-JAX transcription of the torch module
    # (covers residual wiring, conv tap order, per-head attention).  Loose
    # tolerance: MXU inputs are bf16 and the softmax reciprocal is approx.
    ref = _reference_forward(x, pos_embedding, layer_params, ln_g, ln_b,
                             num_heads)
    err = float(jnp.max(jnp.abs(out - ref)))
    assert err < 5e-2, f"max abs err vs reference: {err}"

    # TODO(synk): Dropout layers are treated as identity (inference mode); no RNG path.
    print("KERNEL_OK")
</pallas_src>

<mosaic_0001>
module attributes {stable_mosaic.version = 11 : i64} {
  func.func @kernel(%arg0: i32, %arg1: i32, %arg2: memref<2x8x32xf32, #tpu.memory_space<vmem>>, %arg3: memref<1x8x32xf32, #tpu.memory_space<vmem>>, %arg4: memref<1x13x96xf32, #tpu.memory_space<vmem>>, %arg5: memref<1x32x32xbf16, #tpu.memory_space<vmem>>, %arg6: memref<1x32x96xbf16, #tpu.memory_space<vmem>>, %arg7: memref<1x4x8x32xbf16, #tpu.memory_space<vmem>>, %arg8: memref<1x32x64xbf16, #tpu.memory_space<vmem>>, %arg9: memref<1x64x32xbf16, #tpu.memory_space<vmem>>, %arg10: memref<2x32xf32, #tpu.memory_space<vmem>>, %arg11: memref<2x8x32xf32, #tpu.memory_space<vmem>>, %arg12: memref<16x32xf32, #tpu.memory_space<vmem>>) attributes {dimension_semantics = [#tpu.dimension_semantics<parallel>, #tpu.dimension_semantics<arbitrary>], iteration_bounds = array<i64: 1, 2>, scalar_prefetch = 0 : i64, scratch_operands = 1 : i64, tpu.core_type = #tpu.core_type<tc>, window_params = [{transform_indices = @transform_0, window_bounds = array<i64: 2, 8, 32>}, {pipeline_mode = #tpu.pipeline_mode<synchronous>, transform_indices = @transform_1, window_bounds = array<i64: 1, 8, 32>}, {transform_indices = @transform_2, window_bounds = array<i64: 1, 13, 96>}, {transform_indices = @transform_3, window_bounds = array<i64: 1, 32, 32>}, {transform_indices = @transform_4, window_bounds = array<i64: 1, 32, 96>}, {transform_indices = @transform_5, window_bounds = array<i64: 1, 4, 8, 32>}, {transform_indices = @transform_6, window_bounds = array<i64: 1, 32, 64>}, {transform_indices = @transform_7, window_bounds = array<i64: 1, 64, 32>}, {pipeline_mode = #tpu.pipeline_mode<synchronous>, transform_indices = @transform_8, window_bounds = array<i64: 2, 32>}, {transform_indices = @transform_9, window_bounds = array<i64: 2, 8, 32>}]} {
    %c0_i32 = arith.constant 0 : i32
    %0 = arith.cmpi eq, %arg1, %c0_i32 : i32
    %1 = arith.extui %0 : i1 to i32
    %c0_i32_0 = arith.constant 0 : i32
    %2 = arith.cmpi ne, %1, %c0_i32_0 : i32
    scf.if %2 {
      %c0_78 = arith.constant 0 : index
      %c0_79 = arith.constant 0 : index
      %c0_80 = arith.constant 0 : index
      %242 = vector.load %arg2[%c0_78, %c0_79, %c0_80] : memref<2x8x32xf32, #tpu.memory_space<vmem>>, vector<2x8x32xf32>
      %c0_81 = arith.constant 0 : index
      %c0_82 = arith.constant 0 : index
      %c0_83 = arith.constant 0 : index
      %243 = vector.load %arg3[%c0_81, %c0_82, %c0_83] : memref<1x8x32xf32, #tpu.memory_space<vmem>>, vector<1x8x32xf32>
      %244 = vector.broadcast %243 : vector<1x8x32xf32> to vector<2x8x32xf32>
      %245 = arith.addf %242, %244 : vector<2x8x32xf32>
      %246 = vector.shape_cast %245 : vector<2x8x32xf32> to vector<16x32xf32>
      %c0_84 = arith.constant 0 : index
      %c0_85 = arith.constant 0 : index
      %247 = vector.load %arg12[%c0_84, %c0_85] : memref<16x32xf32, #tpu.memory_space<vmem>>, vector<16x32xf32>
      tpu.vector_store %arg12[%c0_84, %c0_85], %246 {strides = array<i32>} : memref<16x32xf32, #tpu.memory_space<vmem>>, vector<16x32xf32>,
    } else {
    }
    %c0 = arith.constant 0 : index
    %c0_1 = arith.constant 0 : index
    %3 = vector.load %arg12[%c0, %c0_1] : memref<16x32xf32, #tpu.memory_space<vmem>>, vector<16x32xf32>
    %c0_2 = arith.constant 0 : index
    %c0_3 = arith.constant 0 : index
    %c0_4 = arith.constant 0 : index
    %4 = vector.load %arg4[%c0_2, %c0_3, %c0_4] : memref<1x13x96xf32, #tpu.memory_space<vmem>>, vector<1x13x96xf32>
    %5 = vector.shape_cast %4 : vector<1x13x96xf32> to vector<13x96xf32>
    %6 = vector.extract_strided_slice %5 {offsets = [0, 0], sizes = [1, 32], strides = [1, 1]} : vector<13x96xf32> to vector<1x32xf32>
    %7 = vector.extract_strided_slice %5 {offsets = [1, 0], sizes = [1, 32], strides = [1, 1]} : vector<13x96xf32> to vector<1x32xf32>
    %8 = vector.extract_strided_slice %5 {offsets = [2, 0], sizes = [1, 32], strides = [1, 1]} : vector<13x96xf32> to vector<1x32xf32>
    %9 = vector.extract_strided_slice %5 {offsets = [3, 0], sizes = [1, 32], strides = [1, 1]} : vector<13x96xf32> to vector<1x32xf32>
    %10 = vector.extract_strided_slice %5 {offsets = [4, 0], sizes = [1, 32], strides = [1, 1]} : vector<13x96xf32> to vector<1x32xf32>
    %11 = vector.extract_strided_slice %5 {offsets = [5, 0], sizes = [1, 32], strides = [1, 1]} : vector<13x96xf32> to vector<1x32xf32>
    %12 = vector.extract_strided_slice %5 {offsets = [6, 0], sizes = [1, 32], strides = [1, 1]} : vector<13x96xf32> to vector<1x32xf32>
    %13 = vector.extract_strided_slice %5 {offsets = [7, 0], sizes = [1, 96], strides = [1, 1]} : vector<13x96xf32> to vector<1x96xf32>
    %14 = vector.extract_strided_slice %5 {offsets = [8, 0], sizes = [1, 32], strides = [1, 1]} : vector<13x96xf32> to vector<1x32xf32>
    %15 = vector.extract_strided_slice %5 {offsets = [9, 0], sizes = [1, 32], strides = [1, 1]} : vector<13x96xf32> to vector<1x32xf32>
    %16 = vector.extract_strided_slice %5 {offsets = [10, 0], sizes = [1, 32], strides = [1, 1]} : vector<13x96xf32> to vector<1x32xf32>
    %17 = vector.extract_strided_slice %5 {offsets = [11, 0], sizes = [1, 64], strides = [1, 1]} : vector<13x96xf32> to vector<1x64xf32>
    %18 = vector.extract_strided_slice %5 {offsets = [12, 0], sizes = [1, 32], strides = [1, 1]} : vector<13x96xf32> to vector<1x32xf32>
    %cst = arith.constant dense<0.000000e+00> : vector<16xf32>
    %19 = vector.multi_reduction <add>, %3, %cst [1] : vector<16x32xf32> to vector<16xf32>
    %20 = vector.shape_cast %19 : vector<16xf32> to vector<16x1xf32>
    %cst_5 = arith.constant 3.200000e+01 : f32
    %21 = vector.broadcast %cst_5 : f32 to vector<16x1xf32>
    %22 = arith.divf %20, %21 : vector<16x1xf32>
    %23 = vector.broadcast %22 : vector<16x1xf32> to vector<16x32xf32>
    %24 = arith.subf %3, %23 : vector<16x32xf32>
    %25 = arith.mulf %24, %24 : vector<16x32xf32>
    %cst_6 = arith.constant dense<0.000000e+00> : vector<16xf32>
    %26 = vector.multi_reduction <add>, %25, %cst_6 [1] : vector<16x32xf32> to vector<16xf32>
    %27 = vector.shape_cast %26 : vector<16xf32> to vector<16x1xf32>
    %cst_7 = arith.constant 3.200000e+01 : f32
    %28 = vector.broadcast %cst_7 : f32 to vector<16x1xf32>
    %29 = arith.divf %27, %28 : vector<16x1xf32>
    %cst_8 = arith.constant 9.99999997E-7 : f32
    %30 = vector.broadcast %cst_8 : f32 to vector<16x1xf32>
    %31 = arith.addf %29, %30 : vector<16x1xf32>
    %32 = math.rsqrt %31 : vector<16x1xf32>
    %33 = vector.broadcast %32 : vector<16x1xf32> to vector<16x32xf32>
    %34 = arith.mulf %24, %33 : vector<16x32xf32>
    %35 = vector.broadcast %6 : vector<1x32xf32> to vector<16x32xf32>
    %36 = arith.mulf %34, %35 : vector<16x32xf32>
    %37 = vector.broadcast %7 : vector<1x32xf32> to vector<16x32xf32>
    %38 = arith.addf %36, %37 : vector<16x32xf32>
    %39 = tpu.iota {dimensions = array<i32: 0>} : vector<16x1xi32>
    %c8_i32 = arith.constant 8 : i32
    %c0_i32_9 = arith.constant 0 : i32
    %40 = arith.cmpi eq, %c8_i32, %c0_i32_9 : i32
    %c1_i32 = arith.constant 1 : i32
    %41 = arith.select %40, %c1_i32, %c8_i32 : i32
    %42 = vector.broadcast %41 : i32 to vector<16x1xi32>
    %43 = arith.remsi %39, %42 : vector<16x1xi32>
    %c0_i32_10 = arith.constant 0 : i32
    %44 = vector.broadcast %c0_i32_10 : i32 to vector<16x1xi32>
    %45 = arith.cmpi ne, %43, %44 : vector<16x1xi32>
    %c0_i32_11 = arith.constant 0 : i32
    %46 = vector.broadcast %c0_i32_11 : i32 to vector<16x1xi32>
    %47 = arith.cmpi slt, %43, %46 : vector<16x1xi32>
    %c0_i32_12 = arith.constant 0 : i32
    %48 = arith.cmpi slt, %41, %c0_i32_12 : i32
    %49 = vector.broadcast %48 : i1 to vector<16x1xi1>
    %50 = vector.broadcast %49 : vector<16x1xi1> to vector<16x1xi1>
    %51 = arith.xori %47, %50 : vector<16x1xi1>
    %52 = arith.andi %51, %45 : vector<16x1xi1>
    %53 = vector.broadcast %41 : i32 to vector<16x1xi32>
    %54 = arith.addi %43, %53 : vector<16x1xi32>
    %55 = arith.select %52, %54, %43 : vector<16x1xi1>, vector<16x1xi32>
    %c0_i32_13 = arith.constant 0 : i32
    %56 = vector.broadcast %c0_i32_13 : i32 to vector<16x1xi32>
    %57 = arith.cmpi eq, %55, %56 : vector<16x1xi32>
    %c1_i32_14 = arith.constant 1 : i32
    %58 = tpu.dynamic_rotate %38 by %c1_i32_14 dim 0 : vector<16x32xf32>, i32 -> vector<16x32xf32>
    %cst_15 = arith.constant 0.000000e+00 : f32
    %59 = vector.shape_cast %57 : vector<16x1xi1> to vector<16x1xi1>
    %60 = vector.broadcast %59 : vector<16x1xi1> to vector<16x32xi1>
    %61 = vector.broadcast %cst_15 : f32 to vector<16x32xf32>
    %62 = arith.select %60, %61, %58 : vector<16x32xi1>, vector<16x32xf32>
    %c7_i32 = arith.constant 7 : i32
    %63 = vector.broadcast %c7_i32 : i32 to vector<16x1xi32>
    %64 = arith.cmpi eq, %55, %63 : vector<16x1xi32>
    %c15_i32 = arith.constant 15 : i32
    %65 = tpu.dynamic_rotate %38 by %c15_i32 dim 0 : vector<16x32xf32>, i32 -> vector<16x32xf32>
    %cst_16 = arith.constant 0.000000e+00 : f32
    %66 = vector.shape_cast %64 : vector<16x1xi1> to vector<16x1xi1>
    %67 = vector.broadcast %66 : vector<16x1xi1> to vector<16x32xi1>
    %68 = vector.broadcast %cst_16 : f32 to vector<16x32xf32>
    %69 = arith.select %67, %68, %65 : vector<16x32xi1>, vector<16x32xf32>
    %70 = vector.broadcast %8 : vector<1x32xf32> to vector<16x32xf32>
    %71 = arith.mulf %62, %70 : vector<16x32xf32>
    %72 = vector.broadcast %9 : vector<1x32xf32> to vector<16x32xf32>
    %73 = arith.mulf %38, %72 : vector<16x32xf32>
    %74 = arith.addf %71, %73 : vector<16x32xf32>
    %75 = vector.broadcast %10 : vector<1x32xf32> to vector<16x32xf32>
    %76 = arith.mulf %69, %75 : vector<16x32xf32>
    %77 = arith.addf %74, %76 : vector<16x32xf32>
    %78 = vector.broadcast %11 : vector<1x32xf32> to vector<16x32xf32>
    %79 = arith.addf %77, %78 : vector<16x32xf32>
    %80 = arith.truncf %79 : vector<16x32xf32> to vector<16x32xbf16>
    %c0_17 = arith.constant 0 : index
    %c0_18 = arith.constant 0 : index
    %c0_19 = arith.constant 0 : index
    %81 = vector.load %arg5[%c0_17, %c0_18, %c0_19] : memref<1x32x32xbf16, #tpu.memory_space<vmem>>, vector<1x32x32xbf16>
    %82 = vector.shape_cast %81 : vector<1x32x32xbf16> to vector<32x32xbf16>
    %cst_20 = arith.constant dense<0.000000e+00> : vector<16x32xf32>
    %83 = tpu.matmul %80, %82, %cst_20 {dimension_numbers = #tpu.dot_dimension_numbers<[1], [0], [0], [1], [0, 0, 1, 1], [], []>} : vector<16x32xbf16>, vector<32x32xbf16>, vector<16x32xf32> -> vector<16x32xf32>
    %84 = vector.broadcast %12 : vector<1x32xf32> to vector<16x32xf32>
    %85 = arith.addf %83, %84 : vector<16x32xf32>
    %86 = arith.truncf %85 : vector<16x32xf32> to vector<16x32xbf16>
    %c0_21 = arith.constant 0 : index
    %c0_22 = arith.constant 0 : index
    %c0_23 = arith.constant 0 : index
    %87 = vector.load %arg6[%c0_21, %c0_22, %c0_23] : memref<1x32x96xbf16, #tpu.memory_space<vmem>>, vector<1x32x96xbf16>
    %88 = vector.shape_cast %87 : vector<1x32x96xbf16> to vector<32x96xbf16>
    %cst_24 = arith.constant dense<0.000000e+00> : vector<16x96xf32>
    %89 = tpu.matmul %86, %88, %cst_24 {dimension_numbers = #tpu.dot_dimension_numbers<[1], [0], [0], [1], [0, 0, 1, 1], [], []>} : vector<16x32xbf16>, vector<32x96xbf16>, vector<16x96xf32> -> vector<16x96xf32>
    %90 = vector.broadcast %13 : vector<1x96xf32> to vector<16x96xf32>
    %91 = arith.addf %89, %90 : vector<16x96xf32>
    %92 = arith.truncf %91 : vector<16x96xf32> to vector<16x96xbf16>
    %93 = vector.extract_strided_slice %92 {offsets = [0, 0], sizes = [16, 8], strides = [1, 1]} : vector<16x96xbf16> to vector<16x8xbf16>
    %94 = vector.shape_cast %93 : vector<16x8xbf16> to vector<2x8x8xbf16>
    %95 = vector.extract_strided_slice %92 {offsets = [0, 32], sizes = [16, 8], strides = [1, 1]} : vector<16x96xbf16> to vector<16x8xbf16>
    %96 = vector.shape_cast %95 : vector<16x8xbf16> to vector<2x8x8xbf16>
    %97 = vector.extract_strided_slice %92 {offsets = [0, 64], sizes = [16, 8], strides = [1, 1]} : vector<16x96xbf16> to vector<16x8xbf16>
    %98 = vector.shape_cast %97 : vector<16x8xbf16> to vector<2x8x8xbf16>
    "tpu.trace_start"() <{level = 10 : i32, message = "bqd,bkd->bqk"}> : () -> ()
    %cst_25 = arith.constant dense<0.000000e+00> : vector<2x8x8xf32>
    %99 = tpu.matmul %94, %96, %cst_25 {dimension_numbers = #tpu.dot_dimension_numbers<[2], [2], [1], [1], [0, 0, 0, 1, 1, 1], [0], [0]>} : vector<2x8x8xbf16>, vector<2x8x8xbf16>, vector<2x8x8xf32> -> vector<2x8x8xf32>
    "tpu.trace_stop"() : () -> ()
    %cst_26 = arith.constant dense<0xFF800000> : vector<2x8xf32>
    %100 = vector.multi_reduction <maximumf>, %99, %cst_26 [2] : vector<2x8x8xf32> to vector<2x8xf32>
    %101 = vector.shape_cast %100 : vector<2x8xf32> to vector<2x8x1xf32>
    %102 = vector.broadcast %101 : vector<2x8x1xf32> to vector<2x8x8xf32>
    %103 = arith.subf %99, %102 : vector<2x8x8xf32>
    %104 = math.exp %103 : vector<2x8x8xf32>
    %cst_27 = arith.constant dense<0.000000e+00> : vector<2x8xf32>
    %105 = vector.multi_reduction <add>, %104, %cst_27 [2] : vector<2x8x8xf32> to vector<2x8xf32>
    %106 = vector.shape_cast %105 : vector<2x8xf32> to vector<2x8x1xf32>
    %107 = tpu.reciprocal %106 {approx = true} : vector<2x8x1xf32> -> vector<2x8x1xf32>
    %108 = vector.broadcast %107 : vector<2x8x1xf32> to vector<2x8x8xf32>
    %109 = arith.mulf %104, %108 : vector<2x8x8xf32>
    %110 = arith.truncf %109 : vector<2x8x8xf32> to vector<2x8x8xbf16>
    "tpu.trace_start"() <{level = 10 : i32, message = "bqk,bkd->bqd"}> : () -> ()
    %cst_28 = arith.constant dense<0.000000e+00> : vector<2x8x8xf32>
    %111 = tpu.matmul %110, %98, %cst_28 {dimension_numbers = #tpu.dot_dimension_numbers<[2], [1], [1], [2], [0, 0, 0, 1, 1, 2], [0], [0]>} : vector<2x8x8xbf16>, vector<2x8x8xbf16>, vector<2x8x8xf32> -> vector<2x8x8xf32>
    "tpu.trace_stop"() : () -> ()
    %112 = vector.shape_cast %111 : vector<2x8x8xf32> to vector<16x8xf32>
    %113 = arith.truncf %112 : vector<16x8xf32> to vector<16x8xbf16>
    %c0_29 = arith.constant 0 : index
    %c0_30 = arith.constant 0 : index
    %c0_31 = arith.constant 0 : index
    %c0_32 = arith.constant 0 : index
    %114 = vector.load %arg7[%c0_29, %c0_30, %c0_31, %c0_32] : memref<1x4x8x32xbf16, #tpu.memory_space<vmem>>, vector<1x1x8x32xbf16>
    %115 = vector.shape_cast %114 : vector<1x1x8x32xbf16> to vector<8x32xbf16>
    %cst_33 = arith.constant dense<0.000000e+00> : vector<16x32xf32>
    %116 = tpu.matmul %113, %115, %cst_33 {dimension_numbers = #tpu.dot_dimension_numbers<[1], [0], [0], [1], [0, 0, 1, 1], [], []>} : vector<16x8xbf16>, vector<8x32xbf16>, vector<16x32xf32> -> vector<16x32xf32>
    %117 = vector.broadcast %14 : vector<1x32xf32> to vector<16x32xf32>
    %118 = arith.addf %117, %116 : vector<16x32xf32>
    %119 = vector.extract_strided_slice %92 {offsets = [0, 8], sizes = [16, 8], strides = [1, 1]} : vector<16x96xbf16> to vector<16x8xbf16>
    %120 = vector.shape_cast %119 : vector<16x8xbf16> to vector<2x8x8xbf16>
    %121 = vector.extract_strided_slice %92 {offsets = [0, 40], sizes = [16, 8], strides = [1, 1]} : vector<16x96xbf16> to vector<16x8xbf16>
    %122 = vector.shape_cast %121 : vector<16x8xbf16> to vector<2x8x8xbf16>
    %123 = vector.extract_strided_slice %92 {offsets = [0, 72], sizes = [16, 8], strides = [1, 1]} : vector<16x96xbf16> to vector<16x8xbf16>
    %124 = vector.shape_cast %123 : vector<16x8xbf16> to vector<2x8x8xbf16>
    "tpu.trace_start"() <{level = 10 : i32, message = "bqd,bkd->bqk"}> : () -> ()
    %cst_34 = arith.constant dense<0.000000e+00> : vector<2x8x8xf32>
    %125 = tpu.matmul %120, %122, %cst_34 {dimension_numbers = #tpu.dot_dimension_numbers<[2], [2], [1], [1], [0, 0, 0, 1, 1, 1], [0], [0]>} : vector<2x8x8xbf16>, vector<2x8x8xbf16>, vector<2x8x8xf32> -> vector<2x8x8xf32>
    "tpu.trace_stop"() : () -> ()
    %cst_35 = arith.constant dense<0xFF800000> : vector<2x8xf32>
    %126 = vector.multi_reduction <maximumf>, %125, %cst_35 [2] : vector<2x8x8xf32> to vector<2x8xf32>
    %127 = vector.shape_cast %126 : vector<2x8xf32> to vector<2x8x1xf32>
    %128 = vector.broadcast %127 : vector<2x8x1xf32> to vector<2x8x8xf32>
    %129 = arith.subf %125, %128 : vector<2x8x8xf32>
    %130 = math.exp %129 : vector<2x8x8xf32>
    %cst_36 = arith.constant dense<0.000000e+00> : vector<2x8xf32>
    %131 = vector.multi_reduction <add>, %130, %cst_36 [2] : vector<2x8x8xf32> to vector<2x8xf32>
    %132 = vector.shape_cast %131 : vector<2x8xf32> to vector<2x8x1xf32>
    %133 = tpu.reciprocal %132 {approx = true} : vector<2x8x1xf32> -> vector<2x8x1xf32>
    %134 = vector.broadcast %133 : vector<2x8x1xf32> to vector<2x8x8xf32>
    %135 = arith.mulf %130, %134 : vector<2x8x8xf32>
    %136 = arith.truncf %135 : vector<2x8x8xf32> to vector<2x8x8xbf16>
    "tpu.trace_start"() <{level = 10 : i32, message = "bqk,bkd->bqd"}> : () -> ()
    %cst_37 = arith.constant dense<0.000000e+00> : vector<2x8x8xf32>
    %137 = tpu.matmul %136, %124, %cst_37 {dimension_numbers = #tpu.dot_dimension_numbers<[2], [1], [1], [2], [0, 0, 0, 1, 1, 2], [0], [0]>} : vector<2x8x8xbf16>, vector<2x8x8xbf16>, vector<2x8x8xf32> -> vector<2x8x8xf32>
    "tpu.trace_stop"() : () -> ()
    %138 = vector.shape_cast %137 : vector<2x8x8xf32> to vector<16x8xf32>
    %139 = arith.truncf %138 : vector<16x8xf32> to vector<16x8xbf16>
    %c0_38 = arith.constant 0 : index
    %c1 = arith.constant 1 : index
    %c0_39 = arith.constant 0 : index
    %c0_40 = arith.constant 0 : index
    %140 = vector.load %arg7[%c0_38, %c1, %c0_39, %c0_40] : memref<1x4x8x32xbf16, #tpu.memory_space<vmem>>, vector<1x1x8x32xbf16>
    %141 = vector.shape_cast %140 : vector<1x1x8x32xbf16> to vector<8x32xbf16>
    %cst_41 = arith.constant dense<0.000000e+00> : vector<16x32xf32>
    %142 = tpu.matmul %139, %141, %cst_41 {dimension_numbers = #tpu.dot_dimension_numbers<[1], [0], [0], [1], [0, 0, 1, 1], [], []>} : vector<16x8xbf16>, vector<8x32xbf16>, vector<16x32xf32> -> vector<16x32xf32>
    %143 = arith.addf %118, %142 : vector<16x32xf32>
    %144 = vector.extract_strided_slice %92 {offsets = [0, 16], sizes = [16, 8], strides = [1, 1]} : vector<16x96xbf16> to vector<16x8xbf16>
    %145 = vector.shape_cast %144 : vector<16x8xbf16> to vector<2x8x8xbf16>
    %146 = vector.extract_strided_slice %92 {offsets = [0, 48], sizes = [16, 8], strides = [1, 1]} : vector<16x96xbf16> to vector<16x8xbf16>
    %147 = vector.shape_cast %146 : vector<16x8xbf16> to vector<2x8x8xbf16>
    %148 = vector.extract_strided_slice %92 {offsets = [0, 80], sizes = [16, 8], strides = [1, 1]} : vector<16x96xbf16> to vector<16x8xbf16>
    %149 = vector.shape_cast %148 : vector<16x8xbf16> to vector<2x8x8xbf16>
    "tpu.trace_start"() <{level = 10 : i32, message = "bqd,bkd->bqk"}> : () -> ()
    %cst_42 = arith.constant dense<0.000000e+00> : vector<2x8x8xf32>
    %150 = tpu.matmul %145, %147, %cst_42 {dimension_numbers = #tpu.dot_dimension_numbers<[2], [2], [1], [1], [0, 0, 0, 1, 1, 1], [0], [0]>} : vector<2x8x8xbf16>, vector<2x8x8xbf16>, vector<2x8x8xf32> -> vector<2x8x8xf32>
    "tpu.trace_stop"() : () -> ()
    %cst_43 = arith.constant dense<0xFF800000> : vector<2x8xf32>
    %151 = vector.multi_reduction <maximumf>, %150, %cst_43 [2] : vector<2x8x8xf32> to vector<2x8xf32>
    %152 = vector.shape_cast %151 : vector<2x8xf32> to vector<2x8x1xf32>
    %153 = vector.broadcast %152 : vector<2x8x1xf32> to vector<2x8x8xf32>
    %154 = arith.subf %150, %153 : vector<2x8x8xf32>
    %155 = math.exp %154 : vector<2x8x8xf32>
    %cst_44 = arith.constant dense<0.000000e+00> : vector<2x8xf32>
    %156 = vector.multi_reduction <add>, %155, %cst_44 [2] : vector<2x8x8xf32> to vector<2x8xf32>
    %157 = vector.shape_cast %156 : vector<2x8xf32> to vector<2x8x1xf32>
    %158 = tpu.reciprocal %157 {approx = true} : vector<2x8x1xf32> -> vector<2x8x1xf32>
    %159 = vector.broadcast %158 : vector<2x8x1xf32> to vector<2x8x8xf32>
    %160 = arith.mulf %155, %159 : vector<2x8x8xf32>
    %161 = arith.truncf %160 : vector<2x8x8xf32> to vector<2x8x8xbf16>
    "tpu.trace_start"() <{level = 10 : i32, message = "bqk,bkd->bqd"}> : () -> ()
    %cst_45 = arith.constant dense<0.000000e+00> : vector<2x8x8xf32>
    %162 = tpu.matmul %161, %149, %cst_45 {dimension_numbers = #tpu.dot_dimension_numbers<[2], [1], [1], [2], [0, 0, 0, 1, 1, 2], [0], [0]>} : vector<2x8x8xbf16>, vector<2x8x8xbf16>, vector<2x8x8xf32> -> vector<2x8x8xf32>
    "tpu.trace_stop"() : () -> ()
    %163 = vector.shape_cast %162 : vector<2x8x8xf32> to vector<16x8xf32>
    %164 = arith.truncf %163 : vector<16x8xf32> to vector<16x8xbf16>
    %c0_46 = arith.constant 0 : index
    %c2 = arith.constant 2 : index
    %c0_47 = arith.constant 0 : index
    %c0_48 = arith.constant 0 : index
    %165 = vector.load %arg7[%c0_46, %c2, %c0_47, %c0_48] : memref<1x4x8x32xbf16, #tpu.memory_space<vmem>>, vector<1x1x8x32xbf16>
    %166 = vector.shape_cast %165 : vector<1x1x8x32xbf16> to vector<8x32xbf16>
    %cst_49 = arith.constant dense<0.000000e+00> : vector<16x32xf32>
    %167 = tpu.matmul %164, %166, %cst_49 {dimension_numbers = #tpu.dot_dimension_numbers<[1], [0], [0], [1], [0, 0, 1, 1], [], []>} : vector<16x8xbf16>, vector<8x32xbf16>, vector<16x32xf32> -> vector<16x32xf32>
    %168 = arith.addf %143, %167 : vector<16x32xf32>
    %169 = vector.extract_strided_slice %92 {offsets = [0, 24], sizes = [16, 8], strides = [1, 1]} : vector<16x96xbf16> to vector<16x8xbf16>
    %170 = vector.shape_cast %169 : vector<16x8xbf16> to vector<2x8x8xbf16>
    %171 = vector.extract_strided_slice %92 {offsets = [0, 56], sizes = [16, 8], strides = [1, 1]} : vector<16x96xbf16> to vector<16x8xbf16>
    %172 = vector.shape_cast %171 : vector<16x8xbf16> to vector<2x8x8xbf16>
    %173 = vector.extract_strided_slice %92 {offsets = [0, 88], sizes = [16, 8], strides = [1, 1]} : vector<16x96xbf16> to vector<16x8xbf16>
    %174 = vector.shape_cast %173 : vector<16x8xbf16> to vector<2x8x8xbf16>
    "tpu.trace_start"() <{level = 10 : i32, message = "bqd,bkd->bqk"}> : () -> ()
    %cst_50 = arith.constant dense<0.000000e+00> : vector<2x8x8xf32>
    %175 = tpu.matmul %170, %172, %cst_50 {dimension_numbers = #tpu.dot_dimension_numbers<[2], [2], [1], [1], [0, 0, 0, 1, 1, 1], [0], [0]>} : vector<2x8x8xbf16>, vector<2x8x8xbf16>, vector<2x8x8xf32> -> vector<2x8x8xf32>
    "tpu.trace_stop"() : () -> ()
    %cst_51 = arith.constant dense<0xFF800000> : vector<2x8xf32>
    %176 = vector.multi_reduction <maximumf>, %175, %cst_51 [2] : vector<2x8x8xf32> to vector<2x8xf32>
    %177 = vector.shape_cast %176 : vector<2x8xf32> to vector<2x8x1xf32>
    %178 = vector.broadcast %177 : vector<2x8x1xf32> to vector<2x8x8xf32>
    %179 = arith.subf %175, %178 : vector<2x8x8xf32>
    %180 = math.exp %179 : vector<2x8x8xf32>
    %cst_52 = arith.constant dense<0.000000e+00> : vector<2x8xf32>
    %181 = vector.multi_reduction <add>, %180, %cst_52 [2] : vector<2x8x8xf32> to vector<2x8xf32>
    %182 = vector.shape_cast %181 : vector<2x8xf32> to vector<2x8x1xf32>
    %183 = tpu.reciprocal %182 {approx = true} : vector<2x8x1xf32> -> vector<2x8x1xf32>
    %184 = vector.broadcast %183 : vector<2x8x1xf32> to vector<2x8x8xf32>
    %185 = arith.mulf %180, %184 : vector<2x8x8xf32>
    %186 = arith.truncf %185 : vector<2x8x8xf32> to vector<2x8x8xbf16>
    "tpu.trace_start"() <{level = 10 : i32, message = "bqk,bkd->bqd"}> : () -> ()
    %cst_53 = arith.constant dense<0.000000e+00> : vector<2x8x8xf32>
    %187 = tpu.matmul %186, %174, %cst_53 {dimension_numbers = #tpu.dot_dimension_numbers<[2], [1], [1], [2], [0, 0, 0, 1, 1, 2], [0], [0]>} : vector<2x8x8xbf16>, vector<2x8x8xbf16>, vector<2x8x8xf32> -> vector<2x8x8xf32>
    "tpu.trace_stop"() : () -> ()
    %188 = vector.shape_cast %187 : vector<2x8x8xf32> to vector<16x8xf32>
    %189 = arith.truncf %188 : vector<16x8xf32> to vector<16x8xbf16>
    %c0_54 = arith.constant 0 : index
    %c3 = arith.constant 3 : index
    %c0_55 = arith.constant 0 : index
    %c0_56 = arith.constant 0 : index
    %190 = vector.load %arg7[%c0_54, %c3, %c0_55, %c0_56] : memref<1x4x8x32xbf16, #tpu.memory_space<vmem>>, vector<1x1x8x32xbf16>
    %191 = vector.shape_cast %190 : vector<1x1x8x32xbf16> to vector<8x32xbf16>
    %cst_57 = arith.constant dense<0.000000e+00> : vector<16x32xf32>
    %192 = tpu.matmul %189, %191, %cst_57 {dimension_numbers = #tpu.dot_dimension_numbers<[1], [0], [0], [1], [0, 0, 1, 1], [], []>} : vector<16x8xbf16>, vector<8x32xbf16>, vector<16x32xf32> -> vector<16x32xf32>
    %193 = arith.addf %168, %192 : vector<16x32xf32>
    %194 = arith.addf %193, %3 : vector<16x32xf32>
    %cst_58 = arith.constant dense<0.000000e+00> : vector<16xf32>
    %195 = vector.multi_reduction <add>, %194, %cst_58 [1] : vector<16x32xf32> to vector<16xf32>
    %196 = vector.shape_cast %195 : vector<16xf32> to vector<16x1xf32>
    %cst_59 = arith.constant 3.200000e+01 : f32
    %197 = vector.broadcast %cst_59 : f32 to vector<16x1xf32>
    %198 = arith.divf %196, %197 : vector<16x1xf32>
    %199 = vector.broadcast %198 : vector<16x1xf32> to vector<16x32xf32>
    %200 = arith.subf %194, %199 : vector<16x32xf32>
    %201 = arith.mulf %200, %200 : vector<16x32xf32>
    %cst_60 = arith.constant dense<0.000000e+00> : vector<16xf32>
    %202 = vector.multi_reduction <add>, %201, %cst_60 [1] : vector<16x32xf32> to vector<16xf32>
    %203 = vector.shape_cast %202 : vector<16xf32> to vector<16x1xf32>
    %cst_61 = arith.constant 3.200000e+01 : f32
    %204 = vector.broadcast %cst_61 : f32 to vector<16x1xf32>
    %205 = arith.divf %203, %204 : vector<16x1xf32>
    %cst_62 = arith.constant 9.99999997E-7 : f32
    %206 = vector.broadcast %cst_62 : f32 to vector<16x1xf32>
    %207 = arith.addf %205, %206 : vector<16x1xf32>
    %208 = math.rsqrt %207 : vector<16x1xf32>
    %209 = vector.broadcast %208 : vector<16x1xf32> to vector<16x32xf32>
    %210 = arith.mulf %200, %209 : vector<16x32xf32>
    %211 = vector.broadcast %15 : vector<1x32xf32> to vector<16x32xf32>
    %212 = arith.mulf %210, %211 : vector<16x32xf32>
    %213 = vector.broadcast %16 : vector<1x32xf32> to vector<16x32xf32>
    %214 = arith.addf %212, %213 : vector<16x32xf32>
    %215 = arith.truncf %214 : vector<16x32xf32> to vector<16x32xbf16>
    %c0_63 = arith.constant 0 : index
    %c0_64 = arith.constant 0 : index
    %c0_65 = arith.constant 0 : index
    %216 = vector.load %arg8[%c0_63, %c0_64, %c0_65] : memref<1x32x64xbf16, #tpu.memory_space<vmem>>, vector<1x32x64xbf16>
    %217 = vector.shape_cast %216 : vector<1x32x64xbf16> to vector<32x64xbf16>
    %cst_66 = arith.constant dense<0.000000e+00> : vector<16x64xf32>
    %218 = tpu.matmul %215, %217, %cst_66 {dimension_numbers = #tpu.dot_dimension_numbers<[1], [0], [0], [1], [0, 0, 1, 1], [], []>} : vector<16x32xbf16>, vector<32x64xbf16>, vector<16x64xf32> -> vector<16x64xf32>
    %219 = vector.broadcast %17 : vector<1x64xf32> to vector<16x64xf32>
    %220 = arith.addf %218, %219 : vector<16x64xf32>
    %cst_67 = arith.constant 5.000000e-01 : f32
    %221 = vector.broadcast %cst_67 : f32 to vector<16x64xf32>
    %222 = arith.mulf %221, %220 : vector<16x64xf32>
    %cst_68 = arith.constant 0.707106769 : f32
    %223 = vector.broadcast %cst_68 : f32 to vector<16x64xf32>
    %224 = arith.mulf %220, %223 : vector<16x64xf32>
    %225 = math.erf %224 : vector<16x64xf32>
    %cst_69 = arith.constant 1.000000e+00 : f32
    %226 = vector.broadcast %cst_69 : f32 to vector<16x64xf32>
    %227 = arith.addf %226, %225 : vector<16x64xf32>
    %228 = arith.mulf %222, %227 : vector<16x64xf32>
    %229 = arith.truncf %228 : vector<16x64xf32> to vector<16x64xbf16>
    %c0_70 = arith.constant 0 : index
    %c0_71 = arith.constant 0 : index
    %c0_72 = arith.constant 0 : index
    %230 = vector.load %arg9[%c0_70, %c0_71, %c0_72] : memref<1x64x32xbf16, #tpu.memory_space<vmem>>, vector<1x64x32xbf16>
    %231 = vector.shape_cast %230 : vector<1x64x32xbf16> to vector<64x32xbf16>
    %cst_73 = arith.constant dense<0.000000e+00> : vector<16x32xf32>
    %232 = tpu.matmul %229, %231, %cst_73 {dimension_numbers = #tpu.dot_dimension_numbers<[1], [0], [0], [1], [0, 0, 1, 1], [], []>} : vector<16x64xbf16>, vector<64x32xbf16>, vector<16x32xf32> -> vector<16x32xf32>
    %233 = vector.broadcast %18 : vector<1x32xf32> to vector<16x32xf32>
    %234 = arith.addf %232, %233 : vector<16x32xf32>
    %235 = arith.addf %194, %234 : vector<16x32xf32>
    %c1_i32_74 = arith.constant 1 : i32
    %236 = arith.cmpi slt, %arg1, %c1_i32_74 : i32
    %237 = arith.extui %236 : i1 to i32
    %c0_i32_75 = arith.constant 0 : i32
    %238 = arith.cmpi ne, %237, %c0_i32_75 : i32
    scf.if %238 {
      %c0_78 = arith.constant 0 : index
      %c0_79 = arith.constant 0 : index
      %242 = vector.load %arg12[%c0_78, %c0_79] : memref<16x32xf32, #tpu.memory_space<vmem>>, vector<16x32xf32>
      tpu.vector_store %arg12[%c0_78, %c0_79], %235 {strides = array<i32>} : memref<16x32xf32, #tpu.memory_space<vmem>>, vector<16x32xf32>,
    } else {
    }
    %c1_i32_76 = arith.constant 1 : i32
    %239 = arith.cmpi eq, %arg1, %c1_i32_76 : i32
    %240 = arith.extui %239 : i1 to i32
    %c0_i32_77 = arith.constant 0 : i32
    %241 = arith.cmpi ne, %240, %c0_i32_77 : i32
    scf.if %241 {
      %c0_78 = arith.constant 0 : index
      %c0_79 = arith.constant 0 : index
      %242 = vector.load %arg10[%c0_78, %c0_79] : memref<2x32xf32, #tpu.memory_space<vmem>>, vector<1x32xf32>
      %c1_80 = arith.constant 1 : index
      %c0_81 = arith.constant 0 : index
      %243 = vector.load %arg10[%c1_80, %c0_81] : memref<2x32xf32, #tpu.memory_space<vmem>>, vector<1x32xf32>
      %cst_82 = arith.constant dense<0.000000e+00> : vector<16xf32>
      %244 = vector.multi_reduction <add>, %235, %cst_82 [1] : vector<16x32xf32> to vector<16xf32>
      %245 = vector.shape_cast %244 : vector<16xf32> to vector<16x1xf32>
      %cst_83 = arith.constant 3.200000e+01 : f32
      %246 = vector.broadcast %cst_83 : f32 to vector<16x1xf32>
      %247 = arith.divf %245, %246 : vector<16x1xf32>
      %248 = vector.broadcast %247 : vector<16x1xf32> to vector<16x32xf32>
      %249 = arith.subf %235, %248 : vector<16x32xf32>
      %250 = arith.mulf %249, %249 : vector<16x32xf32>
      %cst_84 = arith.constant dense<0.000000e+00> : vector<16xf32>
      %251 = vector.multi_reduction <add>, %250, %cst_84 [1] : vector<16x32xf32> to vector<16xf32>
      %252 = vector.shape_cast %251 : vector<16xf32> to vector<16x1xf32>
      %cst_85 = arith.constant 3.200000e+01 : f32
      %253 = vector.broadcast %cst_85 : f32 to vector<16x1xf32>
      %254 = arith.divf %252, %253 : vector<16x1xf32>
      %cst_86 = arith.constant 9.99999997E-7 : f32
      %255 = vector.broadcast %cst_86 : f32 to vector<16x1xf32>
      %256 = arith.addf %254, %255 : vector<16x1xf32>
      %257 = math.rsqrt %256 : vector<16x1xf32>
      %258 = vector.broadcast %257 : vector<16x1xf32> to vector<16x32xf32>
      %259 = arith.mulf %249, %258 : vector<16x32xf32>
      %260 = vector.broadcast %242 : vector<1x32xf32> to vector<16x32xf32>
      %261 = arith.mulf %259, %260 : vector<16x32xf32>
      %262 = vector.broadcast %243 : vector<1x32xf32> to vector<16x32xf32>
      %263 = arith.addf %261, %262 : vector<16x32xf32>
      %264 = vector.shape_cast %263 : vector<16x32xf32> to vector<2x8x32xf32>
      %c0_87 = arith.constant 0 : index
      %c0_88 = arith.constant 0 : index
      %c0_89 = arith.constant 0 : index
      %265 = vector.load %arg11[%c0_87, %c0_88, %c0_89] : memref<2x8x32xf32, #tpu.memory_space<vmem>>, vector<2x8x32xf32>
      tpu.vector_store %arg11[%c0_87, %c0_88, %c0_89], %264 {strides = array<i32>} : memref<2x8x32xf32, #tpu.memory_space<vmem>>, vector<2x8x32xf32>,
    } else {
    }
    return
  }
  func.func @transform_0(%arg0: i32, %arg1: i32) -> (i32, i32, i32) {
    %c0_i32 = arith.constant 0 : i32
    %c0_i32_0 = arith.constant 0 : i32
    %c0_i32_1 = arith.constant 0 : i32
    return %arg0, %c0_i32, %c0_i32_0 : i32, i32, i32
  }
  func.func @transform_1(%arg0: i32, %arg1: i32) -> (i32, i32, i32) {
    %c0_i32 = arith.constant 0 : i32
    %c0_i32_0 = arith.constant 0 : i32
    %c0_i32_1 = arith.constant 0 : i32
    %c0_i32_2 = arith.constant 0 : i32
    return %c0_i32, %c0_i32_0, %c0_i32_1 : i32, i32, i32
  }
  func.func @transform_2(%arg0: i32, %arg1: i32) -> (i32, i32, i32) {
    %c0_i32 = arith.constant 0 : i32
    %c0_i32_0 = arith.constant 0 : i32
    %c0_i32_1 = arith.constant 0 : i32
    return %arg1, %c0_i32, %c0_i32_0 : i32, i32, i32
  }
  func.func @transform_3(%arg0: i32, %arg1: i32) -> (i32, i32, i32) {
    %c0_i32 = arith.constant 0 : i32
    %c0_i32_0 = arith.constant 0 : i32
    %c0_i32_1 = arith.constant 0 : i32
    return %arg1, %c0_i32, %c0_i32_0 : i32, i32, i32
  }
  func.func @transform_4(%arg0: i32, %arg1: i32) -> (i32, i32, i32) {
    %c0_i32 = arith.constant 0 : i32
    %c0_i32_0 = arith.constant 0 : i32
    %c0_i32_1 = arith.constant 0 : i32
    return %arg1, %c0_i32, %c0_i32_0 : i32, i32, i32
  }
  func.func @transform_5(%arg0: i32, %arg1: i32) -> (i32, i32, i32, i32) {
    %c0_i32 = arith.constant 0 : i32
    %c0_i32_0 = arith.constant 0 : i32
    %c0_i32_1 = arith.constant 0 : i32
    %c0_i32_2 = arith.constant 0 : i32
    return %arg1, %c0_i32, %c0_i32_0, %c0_i32_1 : i32, i32, i32, i32
  }
  func.func @transform_6(%arg0: i32, %arg1: i32) -> (i32, i32, i32) {
    %c0_i32 = arith.constant 0 : i32
    %c0_i32_0 = arith.constant 0 : i32
    %c0_i32_1 = arith.constant 0 : i32
    return %arg1, %c0_i32, %c0_i32_0 : i32, i32, i32
  }
  func.func @transform_7(%arg0: i32, %arg1: i32) -> (i32, i32, i32) {
    %c0_i32 = arith.constant 0 : i32
    %c0_i32_0 = arith.constant 0 : i32
    %c0_i32_1 = arith.constant 0 : i32
    return %arg1, %c0_i32, %c0_i32_0 : i32, i32, i32
  }
  func.func @transform_8(%arg0: i32, %arg1: i32) -> (i32, i32) {
    %c0_i32 = arith.constant 0 : i32
    %c0_i32_0 = arith.constant 0 : i32
    %c0_i32_1 = arith.constant 0 : i32
    return %c0_i32, %c0_i32_0 : i32, i32
  }
  func.func @transform_9(%arg0: i32, %arg1: i32) -> (i32, i32, i32) {
    %c0_i32 = arith.constant 0 : i32
    %c0_i32_0 = arith.constant 0 : i32
    %c0_i32_1 = arith.constant 0 : i32
    return %arg0, %c0_i32, %c0_i32_0 : i32, i32, i32
  }
}

</mosaic_0001>

<llo_original>
// kernel: tpu_custom_call.1
$region0: #{tpu_custom_call.1}
  #allocation0 [shape = 'u32[]', space=smem, size = 0x4, offset = 0x4, fixed_abs, tag = 'smem constant byte address 0x4 - core index']
  #allocation1 [shape = 'u32[72,128]{1,0:T(1,128)}', space=vmem, size = 0x9000, scoped, tag = 'internal scratch']
  #allocation2 [shape = 'f32[16,32]{1,0:T(8,128)}', space=vmem, size = 0x2000, scoped, tag = 'scratch operand']
  %s0 = inlined_call_operand.vmem [shape: f32[2,8,32], index: 0, kind: input, shape index: {}]
  %s1 = inlined_call_operand.vmem [shape: f32[1,8,32], index: 1, kind: input, shape index: {}]
  %s2 = inlined_call_operand.vmem [shape: f32[2,13,96], index: 2, kind: input, shape index: {}]
  %s3 = inlined_call_operand.vmem [shape: bf16[2,32,32], index: 3, kind: input, shape index: {}]
  %s4 = inlined_call_operand.vmem [shape: bf16[2,32,96], index: 4, kind: input, shape index: {}]
  %s5 = inlined_call_operand.vmem [shape: bf16[2,4,8,32], index: 5, kind: input, shape index: {}]
  %s6 = inlined_call_operand.hbm [shape: bf16[2,32,64], index: 6, kind: input, shape index: {}]
  %s7 = inlined_call_operand.vmem [shape: bf16[2,64,32], index: 7, kind: input, shape index: {}]
  %s8 = inlined_call_operand.vmem [shape: f32[2,32], index: 8, kind: input, shape index: {}]
  %s9 = inlined_call_operand.hbm [shape: f32[2,8,32], index: 9, kind: output, shape index: {}]
  %s10 = sld [smem:[#allocation0]]
  $region85: #{tpu_custom_call.1} parent=0
    _
  %s12 = ssub.s32 1, %s10
  %s13 = scalar_select 0, %s12, %s10
  $region1: #{tpu_custom_call.1} parent=0
    #allocation3 [shape = 'u8[16384]{0}', space=vmem, size = 0x4000, scoped, tag = 'input window, operand 6']
    #allocation4 [shape = 's32[2]{0}', space=sflag, size = 0x8, scoped, tag = 'scoped memory for tpu_custom_call.1']
    #allocation5 [shape = 's32[2]{0}', space=sflag, size = 0x8, scoped, tag = 'scoped memory for tpu_custom_call.1']
    #allocation6 [shape = 'u8[8192]{0}', space=vmem, size = 0x2000, scoped, tag = 'output window, operand 0, single buffered']
    %14 = vsyncpa [#allocation4], 0
    %s15 = scalar_lea.sflag [#allocation4], 1
    %16 = vsyncpa %s15, 0
    %17 = vsyncpa [#allocation5], 0
    loop: start=0, step=1, limit=4
    $region2: #{tpu_custom_call.1} parent=1 // loop_pre_header
      _
    $region3: #{tpu_custom_call.1} parent=1 // loop_header
      %s19 = sphi 0, %s23
      %p20 = scmp.ge.s32.totalorder %s19, 4
      %s26 = sphi 0, %s38
      %s27 = sphi 0, %s34
      %s28 = sphi 0, %s26
      %s29 = sphi 0, %s27
      %s30 = sphi 0, %s28
      %s31 = sphi 0, %s29
      %s41 = sphi 0, %s43
      %s44 = sphi 0, %s41
      %s45 = sphi 0, %s44
      %s61 = sphi 0, %s45
      %s65 = sphi 0, %s65
      %s67 = sphi 0, %s65
      %s68 = sphi 0, %s67
      %s82 = sphi 0, %s68
      %s88 = sphi 0, %s90
      %s91 = sphi 0, %s88
      %s92 = sphi 0, %s91
      %s108 = sphi 0, %s92
      %s114 = sphi 0, %s116
      %s117 = sphi 0, %s114
      %s118 = sphi 0, %s117
      %s134 = sphi 0, %s118
      %s140 = sphi 0, %s142
      %s143 = sphi 0, %s140
      %s144 = sphi 0, %s143
      %s160 = sphi 0, %s144
      %s166 = sphi 0, %s168
      %s169 = sphi 0, %s166
      %s170 = sphi 0, %s169
      %s186 = sphi 0, %s170
      %s192 = sphi 0, %s194
      %s195 = sphi 0, %s192
      %s196 = sphi 0, %s195
      %s212 = sphi 0, %s196
      %s218 = sphi 0, %s220
      %s221 = sphi 0, %s218
      %s222 = sphi 0, %s221
      %s238 = sphi 0, %s222
      %s242 = sphi 0, %s242
      %s244 = sphi 0, %s242
      %s245 = sphi 0, %s244
      %s259 = sphi 0, %s245
      %s265 = sphi 0, %s267
      %s268 = sphi 0, %s265
      %s269 = sphi 0, %s268
      %s285 = sphi 0, %s269
    $region4: #{tpu_custom_call.1} parent=1 // loop_header_branch
      %22 = sbr.rel (%p20) target = $region8
    $region5: #{tpu_custom_call.1} parent=1 // loop_body
      %s24 = ssub.s32 %s19, 1
      %s25 = ssub.s32 %s19, 2
      %s32 = sadd.s32 1, %s27
      %p33 = scmp.ge.s32.totalorder %s32, 2
      %s34 = scalar_select %p33, 0, %s32
      %s35 = sadd.s32 1, %s26
      %s36 = scalar_select %p33, %s35, %s26
      %p37 = scmp.ge.s32.totalorder %s36, 1
      %s38 = scalar_select %p37, 0, %s36
      %s39 = ssub.s32 %s26, %s38
      %p40 = scmp.eq.s32.totalorder %s39, 0
      %s42 = sadd.s32 %s41, 1
      %s43 = scalar_select %p40, %s41, %s42
      %p46 = pneg %p40
      %p47 = scmp.eq.s32.totalorder %s19, 1
      %p48 = por %p46, %p47
      %p49 = scmp.ne.s32.totalorder %s41, %s44
      %p50 = scmp.eq.s32.totalorder %s19, 0
      %p51 = por %p49, %p50
      %p52 = scmp.ne.s32.totalorder %s41, %s44
      %p53 = scmp.eq.s32.totalorder %s24, 1
      %p54 = por %p52, %p53
      %p55 = scmp.ne.s32.totalorder %s44, %s45
      %p56 = scmp.eq.s32.totalorder %s24, 0
      %p57 = por %p55, %p56
      %p58 = scmp.ne.s32.totalorder %s44, %s45
      %p59 = scmp.eq.s32.totalorder %s25, 1
      %p60 = por %p58, %p59
      %p62 = scmp.ne.s32.totalorder %s45, %s61
      %p63 = scmp.eq.s32.totalorder %s25, 0
      %p64 = por %p62, %p63
      %s66 = sadd.s32 %s65, 1
      %p69 = scmp.eq.s32.totalorder %s19, 1
      %p70 = scmp.ne.s32.totalorder %s65, %s67
      %p71 = scmp.eq.s32.totalorder %s19, 0
      %p72 = por %p70, %p71
      %p73 = scmp.ne.s32.totalorder %s65, %s67
      %p74 = scmp.eq.s32.totalorder %s24, 1
      %p75 = por %p73, %p74
      %p76 = scmp.ne.s32.totalorder %s67, %s68
      %p77 = scmp.eq.s32.totalorder %s24, 0
      %p78 = por %p76, %p77
      %p79 = scmp.ne.s32.totalorder %s67, %s68
      %p80 = scmp.eq.s32.totalorder %s25, 1
      %p81 = por %p79, %p80
      %p83 = scmp.ne.s32.totalorder %s68, %s82
      %p84 = scmp.eq.s32.totalorder %s25, 0
      %p85 = por %p83, %p84
      %s86 = ssub.s32 %s27, %s34
      %p87 = scmp.eq.s32.totalorder %s86, 0
      %s89 = sadd.s32 %s88, 1
      %s90 = scalar_select %p87, %s88, %s89
      %p93 = pneg %p87
      %p94 = scmp.eq.s32.totalorder %s19, 1
      %p95 = por %p93, %p94
      %p96 = scmp.ne.s32.totalorder %s88, %s91
      %p97 = scmp.eq.s32.totalorder %s19, 0
      %p98 = por %p96, %p97
      %p99 = scmp.ne.s32.totalorder %s88, %s91
      %p100 = scmp.eq.s32.totalorder %s24, 1
      %p101 = por %p99, %p100
      %p102 = scmp.ne.s32.totalorder %s91, %s92
      %p103 = scmp.eq.s32.totalorder %s24, 0
      %p104 = por %p102, %p103
      %p105 = scmp.ne.s32.totalorder %s91, %s92
      %p106 = scmp.eq.s32.totalorder %s25, 1
      %p107 = por %p105, %p106
      %p109 = scmp.ne.s32.totalorder %s92, %s108
      %p110 = scmp.eq.s32.totalorder %s25, 0
      %p111 = por %p109, %p110
      %s112 = ssub.s32 %s27, %s34
      %p113 = scmp.eq.s32.totalorder %s112, 0
      %s115 = sadd.s32 %s114, 1
      %s116 = scalar_select %p113, %s114, %s115
      %p119 = pneg %p113
      %p120 = scmp.eq.s32.totalorder %s19, 1
      %p121 = por %p119, %p120
      %p122 = scmp.ne.s32.totalorder %s114, %s117
      %p123 = scmp.eq.s32.totalorder %s19, 0
      %p124 = por %p122, %p123
      %p125 = scmp.ne.s32.totalorder %s114, %s117
      %p126 = scmp.eq.s32.totalorder %s24, 1
      %p127 = por %p125, %p126
      %p128 = scmp.ne.s32.totalorder %s117, %s118
      %p129 = scmp.eq.s32.totalorder %s24, 0
      %p130 = por %p128, %p129
      %p131 = scmp.ne.s32.totalorder %s117, %s118
      %p132 = scmp.eq.s32.totalorder %s25, 1
      %p133 = por %p131, %p132
      %p135 = scmp.ne.s32.totalorder %s118, %s134
      %p136 = scmp.eq.s32.totalorder %s25, 0
      %p137 = por %p135, %p136
      %s138 = ssub.s32 %s27, %s34
      %p139 = scmp.eq.s32.totalorder %s138, 0
      %s141 = sadd.s32 %s140, 1
      %s142 = scalar_select %p139, %s140, %s141
      %p145 = pneg %p139
      %p146 = scmp.eq.s32.totalorder %s19, 1
      %p147 = por %p145, %p146
      %p148 = scmp.ne.s32.totalorder %s140, %s143
      %p149 = scmp.eq.s32.totalorder %s19, 0
      %p150 = por %p148, %p149
      %p151 = scmp.ne.s32.totalorder %s140, %s143
      %p152 = scmp.eq.s32.totalorder %s24, 1
      %p153 = por %p151, %p152
      %p154 = scmp.ne.s32.totalorder %s143, %s144
      %p155 = scmp.eq.s32.totalorder %s24, 0
      %p156 = por %p154, %p155
      %p157 = scmp.ne.s32.totalorder %s143, %s144
      %p158 = scmp.eq.s32.totalorder %s25, 1
      %p159 = por %p157, %p158
      %p161 = scmp.ne.s32.totalorder %s144, %s160
      %p162 = scmp.eq.s32.totalorder %s25, 0
      %p163 = por %p161, %p162
      %s164 = ssub.s32 %s27, %s34
      %p165 = scmp.eq.s32.totalorder %s164, 0
      %s167 = sadd.s32 %s166, 1
      %s168 = scalar_select %p165, %s166, %s167
      %p171 = pneg %p165
      %p172 = scmp.eq.s32.totalorder %s19, 1
      %p173 = por %p171, %p172
      %p174 = scmp.ne.s32.totalorder %s166, %s169
      %p175 = scmp.eq.s32.totalorder %s19, 0
      %p176 = por %p174, %p175
      %p177 = scmp.ne.s32.totalorder %s166, %s169
      %p178 = scmp.eq.s32.totalorder %s24, 1
      %p179 = por %p177, %p178
      %p180 = scmp.ne.s32.totalorder %s169, %s170
      %p181 = scmp.eq.s32.totalorder %s24, 0
      %p182 = por %p180, %p181
      %p183 = scmp.ne.s32.totalorder %s169, %s170
      %p184 = scmp.eq.s32.totalorder %s25, 1
      %p185 = por %p183, %p184
      %p187 = scmp.ne.s32.totalorder %s170, %s186
      %p188 = scmp.eq.s32.totalorder %s25, 0
      %p189 = por %p187, %p188
      %s190 = ssub.s32 %s27, %s34
      %p191 = scmp.eq.s32.totalorder %s190, 0
      %s193 = sadd.s32 %s192, 1
      %s194 = scalar_select %p191, %s192, %s193
      %p197 = pneg %p191
      %p198 = scmp.eq.s32.totalorder %s19, 1
      %p199 = por %p197, %p198
      %p200 = scmp.ne.s32.totalorder %s192, %s195
      %p201 = scmp.eq.s32.totalorder %s19, 0
      %p202 = por %p200, %p201
      %p203 = scmp.ne.s32.totalorder %s192, %s195
      %p204 = scmp.eq.s32.totalorder %s24, 1
      %p205 = por %p203, %p204
      %p206 = scmp.ne.s32.totalorder %s195, %s196
      %p207 = scmp.eq.s32.totalorder %s24, 0
      %p208 = por %p206, %p207
      %p209 = scmp.ne.s32.totalorder %s195, %s196
      %p210 = scmp.eq.s32.totalorder %s25, 1
      %p211 = por %p209, %p210
      %p213 = scmp.ne.s32.totalorder %s196, %s212
      %p214 = scmp.eq.s32.totalorder %s25, 0
      %p215 = por %p213, %p214
      %s216 = ssub.s32 %s27, %s34
      %p217 = scmp.eq.s32.totalorder %s216, 0
      %s219 = sadd.s32 %s218, 1
      %s220 = scalar_select %p217, %s218, %s219
      %p223 = pneg %p217
      %p224 = scmp.eq.s32.totalorder %s19, 1
      %p225 = por %p223, %p224
      %p226 = scmp.ne.s32.totalorder %s218, %s221
      %p227 = scmp.eq.s32.totalorder %s19, 0
      %p228 = por %p226, %p227
      %p229 = scmp.ne.s32.totalorder %s218, %s221
      %p230 = scmp.eq.s32.totalorder %s24, 1
      %p231 = por %p229, %p230
      %p232 = scmp.ne.s32.totalorder %s221, %s222
      %p233 = scmp.eq.s32.totalorder %s24, 0
      %p234 = por %p232, %p233
      %p235 = scmp.ne.s32.totalorder %s221, %s222
      %p236 = scmp.eq.s32.totalorder %s25, 1
      %p237 = por %p235, %p236
      %p239 = scmp.ne.s32.totalorder %s222, %s238
      %p240 = scmp.eq.s32.totalorder %s25, 0
      %p241 = por %p239, %p240
      %s243 = sadd.s32 %s242, 1
      %p246 = scmp.eq.s32.totalorder %s19, 1
      %p247 = scmp.ne.s32.totalorder %s242, %s244
      %p248 = scmp.eq.s32.totalorder %s19, 0
      %p249 = por %p247, %p248
      %p250 = scmp.ne.s32.totalorder %s242, %s244
      %p251 = scmp.eq.s32.totalorder %s24, 1
      %p252 = por %p250, %p251
      %p253 = scmp.ne.s32.totalorder %s244, %s245
      %p254 = scmp.eq.s32.totalorder %s24, 0
      %p255 = por %p253, %p254
      %p256 = scmp.ne.s32.totalorder %s244, %s245
      %p257 = scmp.eq.s32.totalorder %s25, 1
      %p258 = por %p256, %p257
      %p260 = scmp.ne.s32.totalorder %s245, %s259
      %p261 = scmp.eq.s32.totalorder %s25, 0
      %p262 = por %p260, %p261
      %s263 = ssub.s32 %s26, %s38
      %p264 = scmp.eq.s32.totalorder %s263, 0
      %s266 = sadd.s32 %s265, 1
      %s267 = scalar_select %p264, %s265, %s266
      %p270 = pneg %p264
      %p271 = scmp.eq.s32.totalorder %s19, 1
      %p272 = por %p270, %p271
      %p273 = scmp.ne.s32.totalorder %s265, %s268
      %p274 = scmp.eq.s32.totalorder %s19, 0
      %p275 = por %p273, %p274
      %p276 = scmp.ne.s32.totalorder %s265, %s268
      %p277 = scmp.eq.s32.totalorder %s24, 1
      %p278 = por %p276, %p277
      %p279 = scmp.ne.s32.totalorder %s268, %s269
      %p280 = scmp.eq.s32.totalorder %s24, 0
      %p281 = por %p279, %p280
      %p282 = scmp.ne.s32.totalorder %s268, %s269
      %p283 = scmp.eq.s32.totalorder %s25, 1
      %p284 = por %p282, %p283
      %p286 = scmp.ne.s32.totalorder %s269, %s285
      %p287 = scmp.eq.s32.totalorder %s25, 0
      %p288 = por %p286, %p287
      %p289 = scmp.le.s32.totalorder 1, %s19
      %p290 = scmp.lt.s32.totalorder %s19, 3
      %p291 = pnand %p289, %p290
      %p292 = pneg %p291
      // Predicated region
      $region9: #{tpu_custom_call.1} parent=5 // pred_check
        _
      $region10: #{tpu_custom_call.1} parent=5 // pred_check_branch
        %294 = sbr.rel (%p291) target = $region12
      $region11: #{tpu_custom_call.1} parent=5 // pred_region
        %s295 = ssub.s32 %s19, 1
        // Predicated region
        $region13: #{tpu_custom_call.1} parent=11 // pred_check
          %p296 = pneg %p57
        $region14: #{tpu_custom_call.1} parent=11 // pred_check_branch
          %298 = sbr.rel (%p296) target = $region16
        $region15: #{tpu_custom_call.1} parent=11 // pred_region
          %s299 = smul.u32 2, %s28
          %p300 = scmp.lt.s32.totalorder %s299, 1
          %s301 = scalar_select %p300, %s299, 1
          %s302 = smul.addr %s301, 8
          %s303 = scalar_lea.vmem %s0, %s302
          %s304 = smul.u32 2, %s28
        $region16: #{tpu_custom_call.1} parent=11 // pred_fallthru
          _
        // Predicated region
        $region17: #{tpu_custom_call.1} parent=11 // pred_check
          %p305 = pneg %p78
        $region18: #{tpu_custom_call.1} parent=11 // pred_check_branch
          %307 = sbr.rel (%p305) target = $region20
        $region19: #{tpu_custom_call.1} parent=11 // pred_region
          _
        $region20: #{tpu_custom_call.1} parent=11 // pred_fallthru
          _
        // Predicated region
        $region21: #{tpu_custom_call.1} parent=11 // pred_check
          %p308 = pneg %p255
        $region22: #{tpu_custom_call.1} parent=11 // pred_check_branch
          %310 = sbr.rel (%p308) target = $region24
        $region23: #{tpu_custom_call.1} parent=11 // pred_region
          _
        $region24: #{tpu_custom_call.1} parent=11 // pred_fallthru
          _
      $region12: #{tpu_custom_call.1} parent=5 // pred_fallthru
        _
      %p311 = scmp.lt.s32.totalorder %s19, 2
      // Predicated region
      $region25: #{tpu_custom_call.1} parent=5 // pred_check
        %p312 = pneg %p311
      $region26: #{tpu_custom_call.1} parent=5 // pred_check_branch
        %314 = sbr.rel (%p312) target = $region28
      $region27: #{tpu_custom_call.1} parent=5 // pred_region
        // Predicated region
        $region29: #{tpu_custom_call.1} parent=27 // pred_check
          %p315 = pneg %p98
        $region30: #{tpu_custom_call.1} parent=27 // pred_check_branch
          %317 = sbr.rel (%p315) target = $region32
        $region31: #{tpu_custom_call.1} parent=27 // pred_region
          %p318 = scmp.lt.s32.totalorder %s27, 1
          %s319 = scalar_select %p318, %s27, 1
          %s320 = smul.addr %s319, 2
          %s321 = smul.addr %s320, 8
          %s322 = scalar_lea.vmem %s2, %s321
        $region32: #{tpu_custom_call.1} parent=27 // pred_fallthru
          _
        // Predicated region
        $region33: #{tpu_custom_call.1} parent=27 // pred_check
          %p323 = pneg %p124
        $region34: #{tpu_custom_call.1} parent=27 // pred_check_branch
          %325 = sbr.rel (%p323) target = $region36
        $region35: #{tpu_custom_call.1} parent=27 // pred_region
          %p326 = scmp.lt.s32.totalorder %s27, 1
          %s327 = scalar_select %p326, %s27, 1
          %s328 = smul.addr %s327, 4
          %s329 = smul.addr %s328, 4
          %s330 = scalar_lea.vmem %s3, %s329
        $region36: #{tpu_custom_call.1} parent=27 // pred_fallthru
          _
        // Predicated region
        $region37: #{tpu_custom_call.1} parent=27 // pred_check
          %p331 = pneg %p150
        $region38: #{tpu_custom_call.1} parent=27 // pred_check_branch
          %333 = sbr.rel (%p331) target = $region40
        $region39: #{tpu_custom_call.1} parent=27 // pred_region
          %p334 = scmp.lt.s32.totalorder %s27, 1
          %s335 = scalar_select %p334, %s27, 1
          %s336 = smul.addr %s335, 4
          %s337 = smul.addr %s336, 4
          %s338 = scalar_lea.vmem %s4, %s337
        $region40: #{tpu_custom_call.1} parent=27 // pred_fallthru
          _
        // Predicated region
        $region41: #{tpu_custom_call.1} parent=27 // pred_check
          %p339 = pneg %p176
        $region42: #{tpu_custom_call.1} parent=27 // pred_check_branch
          %341 = sbr.rel (%p339) target = $region44
        $region43: #{tpu_custom_call.1} parent=27 // pred_region
          %p342 = scmp.lt.s32.totalorder %s27, 1
          %s343 = scalar_select %p342, %s27, 1
          %s344 = smul.addr %s343, 4
          %s345 = smul.addr %s344, 4
          %s346 = scalar_lea.vmem %s5, %s345
        $region44: #{tpu_custom_call.1} parent=27 // pred_fallthru
          _
        // Predicated region
        $region45: #{tpu_custom_call.1} parent=27 // pred_check
          %p347 = pneg %p202
        $region46: #{tpu_custom_call.1} parent=27 // pred_check_branch
          %349 = sbr.rel (%p347) target = $region48
        $region47: #{tpu_custom_call.1} parent=27 // pred_region
          %s350 = sand.u32 %s192, 1
          %s351 = scalar_lea.sflag [#allocation4], %s350
          %s352 = sand.u32 %s192, 1
          %s353 = smul.addr %s352, 16
          %s354 = scalar_lea.vmem [#allocation3], %s353
          %356 = vsyncadd %s351, 0
          %s357 = smul.addr %s27, 4
          %s358 = smul.addr %s357, 4
          %s359 = scalar_lea.hbm %s6, %s358
          %s360 = sshll.u32 %s359, 4
          %s361 = int_to_ptr.hbm [resolvable:$true] %s360
          %s362 = sshll.u32 %s354, 4
          %s363 = int_to_ptr.vmem [resolvable:$true] %s362
          %368 = dma.hbm_to_vmem [thread:$0]  %s361, 256, %s363, %s351, 64, 64, 4
        $region48: #{tpu_custom_call.1} parent=27 // pred_fallthru
          _
        // Predicated region
        $region49: #{tpu_custom_call.1} parent=27 // pred_check
          %p369 = pneg %p228
        $region50: #{tpu_custom_call.1} parent=27 // pred_check_branch
          %371 = sbr.rel (%p369) target = $region52
        $region51: #{tpu_custom_call.1} parent=27 // pred_region
          %p372 = scmp.lt.s32.totalorder %s27, 1
          %s373 = scalar_select %p372, %s27, 1
          %s374 = smul.addr %s373, 8
          %s375 = smul.addr %s374, 4
          %s376 = scalar_lea.vmem %s7, %s375
        $region52: #{tpu_custom_call.1} parent=27 // pred_fallthru
          _
      $region28: #{tpu_custom_call.1} parent=5 // pred_fallthru
        _
      %p377 = scmp.le.s32.totalorder 1, %s19
      %p378 = scmp.lt.s32.totalorder %s19, 3
      %p379 = pnand %p377, %p378
      %p380 = pneg %p379
      // Predicated region
      $region53: #{tpu_custom_call.1} parent=5 // pred_check
        _
      $region54: #{tpu_custom_call.1} parent=5 // pred_check_branch
        %382 = sbr.rel (%p379) target = $region56
      $region55: #{tpu_custom_call.1} parent=5 // pred_region
        %s383 = ssub.s32 %s19, 1
        %s384 = sand.u32 %s195, 1
        %s385 = scalar_lea.sflag [#allocation4], %s384
        %s386 = sand.u32 %s195, 1
        %s387 = smul.addr %s386, 16
        %s388 = scalar_lea.vmem [#allocation3], %s387
        // Predicated region
        $region57: #{tpu_custom_call.1} parent=55 // pred_check
          %p389 = pneg %p208
        $region58: #{tpu_custom_call.1} parent=55 // pred_check_branch
          %391 = sbr.rel (%p389) target = $region60
        $region59: #{tpu_custom_call.1} parent=55 // pred_region
          %393 = dma.done %s385, 256
        $region60: #{tpu_custom_call.1} parent=55 // pred_fallthru
          _
        %s394 = smul.u32 2, %s28
        %p395 = scmp.lt.s32.totalorder %s394, 1
        %s396 = scalar_select %p395, %s394, 1
        %s397 = smul.addr %s396, 8
        %s398 = scalar_lea.vmem %s0, %s397
        %p399 = pneg %p57
        %p400 = pneg %p54
        %p401 = pneg %p78
        %p402 = pneg %p75
        %p403 = scmp.lt.s32.totalorder %s29, 1
        %s404 = scalar_select %p403, %s29, 1
        %s405 = smul.addr %s404, 2
        %s406 = smul.addr %s405, 8
        %s407 = scalar_lea.vmem %s2, %s406
        %p408 = pneg %p104
        %p409 = pneg %p101
        %p410 = scmp.lt.s32.totalorder %s29, 1
        %s411 = scalar_select %p410, %s29, 1
        %s412 = smul.addr %s411, 4
        %s413 = smul.addr %s412, 4
        %s414 = scalar_lea.vmem %s3, %s413
        %p415 = pneg %p130
        %p416 = pneg %p127
        %p417 = scmp.lt.s32.totalorder %s29, 1
        %s418 = scalar_select %p417, %s29, 1
        %s419 = smul.addr %s418, 4
        %s420 = smul.addr %s419, 4
        %s421 = scalar_lea.vmem %s4, %s420
        %p422 = pneg %p156
        %p423 = pneg %p153
        %p424 = scmp.lt.s32.totalorder %s29, 1
        %s425 = scalar_select %p424, %s29, 1
        %s426 = smul.addr %s425, 4
        %s427 = smul.addr %s426, 4
        %s428 = scalar_lea.vmem %s5, %s427
        %p429 = pneg %p182
        %p430 = pneg %p179
        %s431 = sand.u32 %s195, 1
        %s432 = scalar_lea.sflag [#allocation4], %s431
        %s433 = sand.u32 %s195, 1
        %s434 = smul.addr %s433, 16
        %s435 = scalar_lea.vmem [#allocation3], %s434
        %p436 = pneg %p208
        %p437 = pneg %p205
        %p438 = scmp.lt.s32.totalorder %s29, 1
        %s439 = scalar_select %p438, %s29, 1
        %s440 = smul.addr %s439, 8
        %s441 = smul.addr %s440, 4
        %s442 = scalar_lea.vmem %s7, %s441
        %p443 = pneg %p234
        %p444 = pneg %p231
        %p445 = pneg %p255
        %p446 = pneg %p252
        %p447 = pneg %p281
        %p448 = pneg %p278
        %s449 = smul.u32 2, %s28
        %p450 = scmp.lt.s32.totalorder %s449, 1
        %s451 = scalar_select %p450, %s449, 1
        %s452 = smul.addr %s451, 8
        %s453 = scalar_lea.vmem %s0, %s452
        %s454 = smul.u32 2, %s28
        %p455 = scmp.lt.s32.totalorder %s29, 1
        %s456 = scalar_select %p455, %s29, 1
        %s457 = smul.addr %s456, 2
        %s458 = smul.addr %s457, 8
        %s459 = scalar_lea.vmem %s2, %s458
        %p460 = scmp.lt.s32.totalorder %s29, 1
        %s461 = scalar_select %p460, %s29, 1
        %s462 = smul.addr %s461, 4
        %s463 = smul.addr %s462, 4
        %s464 = scalar_lea.vmem %s3, %s463
        %p465 = scmp.lt.s32.totalorder %s29, 1
        %s466 = scalar_select %p465, %s29, 1
        %s467 = smul.addr %s466, 4
        %s468 = smul.addr %s467, 4
        %s469 = scalar_lea.vmem %s4, %s468
        %p470 = scmp.lt.s32.totalorder %s29, 1
        %s471 = scalar_select %p470, %s29, 1
        %s472 = smul.addr %s471, 4
        %s473 = smul.addr %s472, 4
        %s474 = scalar_lea.vmem %s5, %s473
        %p475 = scmp.lt.s32.totalorder %s29, 1
        %s476 = scalar_select %p475, %s29, 1
        %s477 = smul.addr %s476, 8
        %s478 = smul.addr %s477, 4
        %s479 = scalar_lea.vmem %s7, %s478
        %s480 = smul.u32 2, %s28
        %p482 = scmp.eq.s32.totalorder %s29, 0
        // Predicated region
        $region61: #{tpu_custom_call.1} parent=55 // pred_check
          %p483 = pneg %p482
        $region62: #{tpu_custom_call.1} parent=55 // pred_check_branch
          %485 = sbr.rel (%p483) target = $region64
        $region63: #{tpu_custom_call.1} parent=55 // pred_region
          %v486 = vld [vmem:[%s453] sm:$0xff]
          %v487 = vld [vmem:[%s453 + $0x8] sm:$0xff]
          %v488 = vld [vmem:[%s1] sm:$0xff]
          %v489 = vadd.f32 %v486, %v488
          %v490 = vadd.f32 %v487, %v488
          %vm491 = vcmask 261120
          %492 = vst.msk [vmem:[#allocation2] sm:$0xff] %vm491, %v489
          %493 = vst.msk [vmem:[#allocation2 + $0x8] sm:$0xff] %vm491, %v490
        $region64: #{tpu_custom_call.1} parent=55 // pred_fallthru
          _
        %v494 = vld [vmem:[#allocation2] sm:$0xff]
        %v495 = vld [vmem:[#allocation2 + $0x8] sm:$0xff]
        %v496 = vld [vmem:[%s459] sm:$0xff]
        %v497 = vld [vmem:[%s459 + $0x8] sm:$0x1f]
        %vm498 = vcmask 261120
        %v499 = vsel %vm498, %v494, 0.0
        %500 = vadd.xlane.f32.xlu0 %v499
        %v501 = vpop.xlane.xlu0 %500
        %v502 = vsel %vm498, %v495, 0.0
        %503 = vadd.xlane.f32.xlu0 %v502
        %v504 = vpop.xlane.xlu0 %503
        %v505 = vrcp.pop 32.0
        %v506 = vmul.f32 32.0, %v505
        %v507 = vsub.f32 1.0, %v506
        %v508 = vmul.f32 %v505, %v507
        %v509 = vadd.f32 %v505, %v508
        %vm510 = vweird.f32 %v505
        %v511 = vsel %vm510, %v505, %v509
        %v512 = vmul.f32 %v501, %v511
        %v513 = vmul.f32 %v504, %v511
        %v514 = vsub.f32 %v494, %v512
        %v515 = vsub.f32 %v495, %v513
        %v516 = vmul.f32 %v514, %v514
        %v517 = vmul.f32 %v515, %v515
        %v518 = vsel %vm498, %v516, 0.0
        %519 = vadd.xlane.f32.xlu0 %v518
        %v520 = vpop.xlane.xlu0 %519
        %v521 = vsel %vm498, %v517, 0.0
        %522 = vadd.xlane.f32.xlu0 %v521
        %v523 = vpop.xlane.xlu0 %522
        %v524 = vmul.f32 %v520, %v511
        %v525 = vmul.f32 %v523, %v511
        %v526 = vadd.f32 %v524, 1e-06
        %v527 = vadd.f32 %v525, 1e-06
        %v528 = vrsqrt.pop %v526
        %v529 = vmul.f32 %v528, %v526
        %v530 = vmul.f32 %v529, %v528
        %v531 = vmul.f32 0.5, %v530
        %v532 = vsub.f32 1.5, %v531
        %v533 = vmul.f32 %v528, %v532
        %vm534 = vweird.f32 %v526
        %vm535 = vweird.f32 %v528
        %vm536 = vmor %vm534, %vm535
        %v537 = vsel %vm536, %v528, %v533
        %v538 = vrsqrt.pop %v527
        %v539 = vmul.f32 %v538, %v527
        %v540 = vmul.f32 %v539, %v538
        %v541 = vmul.f32 0.5, %v540
        %v542 = vsub.f32 1.5, %v541
        %v543 = vmul.f32 %v538, %v542
        %vm544 = vweird.f32 %v527
        %vm545 = vweird.f32 %v538
        %vm546 = vmor %vm544, %vm545
        %v547 = vsel %vm546, %v538, %v543
        %v548 = vmul.f32 %v514, %v537
        %v549 = vmul.f32 %v515, %v547
        %v550 = vperm.slane %v496, 0
        %v551 = vmul.f32 %v548, %v550
        %v552 = vmul.f32 %v549, %v550
        %v553 = vperm.slane %v496, 1
        %v554 = vadd.f32 %v551, %v553
        %v555 = vadd.f32 %v552, %v553
        %v556 = vlaneseq
        %v557 = vshrl.u32 %v556, 7
        %v558 = vadd.s32 %v557, 8
        %vm559 = vcmp.lt.s32.totalorder %v557, 0
        %v560 = vsub.s32 0, %v557
        %v561 = vsel %vm559, %v560, %v557
        %v562 = vshrl.u32 %v561, 3
        %v563 = vand.u32 %v561, 7
        %v564 = vsub.s32 0, %v563
        %v565 = vsel %vm559, %v564, %v563
        %vm566 = vcmp.lt.s32.totalorder %v558, 0
        %v567 = vsub.s32 0, %v558
        %v568 = vsel %vm566, %v567, %v558
        %v569 = vshrl.u32 %v568, 3
        %v570 = vand.u32 %v568, 7
        %v571 = vsub.s32 0, %v570
        %v572 = vsel %vm566, %v571, %v570
        %vm573 = vcmp.ne.s32.totalorder %v565, 0
        %vm574 = vcmp.ne.s32.totalorder %v572, 0
        %vm575 = vcmp.lt.s32.totalorder %v565, 0
        %vm576 = vcmp.lt.s32.totalorder %v572, 0
        %vm577 = vmand %vm575, %vm573
        %vm578 = vmand %vm576, %vm574
        %v579 = vadd.s32 %v565, 8
        %v580 = vadd.s32 %v572, 8
        %v581 = vsel %vm577, %v579, %v565
        %v582 = vsel %vm578, %v580, %v572
        %vm583 = vcmp.eq.s32.totalorder %v581, 0
        %vm584 = vcmp.eq.s32.totalorder %v582, 0
        %v585 = vrot.slane %v554, 7
        %v586 = vrot.slane %v555, 7
        %vm587 = vcmp.lt.s32.totalorder %v557, 1
        %v588 = vsel %vm587, %v585, %v586
        %v589 = vsel %vm587, %v586, %v585
        %v590 = vsel %vm583, 1, 0
        %v591 = vsel %vm584, 1, 0
        %vm592 = vcmp.eq.s32.totalorder %v590, 1
        %vm593 = vcmp.eq.s32.totalorder %v591, 1
        %v594 = vsel %vm592, 0.0, %v589
        %v595 = vsel %vm593, 0.0, %v588
        %vm596 = vcmp.eq.s32.totalorder %v581, 7
        %vm597 = vcmp.eq.s32.totalorder %v582, 7
        %v598 = vrot.slane %v554, 1
        %v599 = vrot.slane %v555, 1
        %vm600 = vcmp.lt.s32.totalorder %v557, 7
        %v601 = vsel %vm600, %v598, %v599
        %v602 = vsel %vm600, %v599, %v598
        %v603 = vsel %vm596, 1, 0
        %v604 = vsel %vm597, 1, 0
        %vm605 = vcmp.eq.s32.totalorder %v603, 1
        %vm606 = vcmp.eq.s32.totalorder %v604, 1
        %v607 = vsel %vm605, 0.0, %v601
        %v608 = vsel %vm606, 0.0, %v602
        %v609 = vperm.slane %v496, 2
        %v610 = vmul.f32 %v594, %v609
        %v611 = vmul.f32 %v595, %v609
        %v612 = vperm.slane %v496, 3
        %v613 = vmul.f32 %v554, %v612
        %v614 = vmul.f32 %v555, %v612
        %v615 = vadd.f32 %v610, %v613
        %v616 = vadd.f32 %v611, %v614
        %v617 = vperm.slane %v496, 4
        %v618 = vmul.f32 %v607, %v617
        %v619 = vmul.f32 %v608, %v617
        %v620 = vadd.f32 %v615, %v618
        %v621 = vadd.f32 %v616, %v619
        %v622 = vperm.slane %v496, 5
        %v623 = vadd.f32 %v620, %v622
        %v624 = vadd.f32 %v621, %v622
        %v625 = vpack.c.bf16 %v624, %v623
        %v626 = vld [vmem:[%s464] sm:$0xf]
        %v627 = vld [vmem:[%s464 + $0x4] sm:$0xf]
        %v628 = vld [vmem:[%s464 + $0x8] sm:$0xf]
        %v629 = vld [vmem:[%s464 + $0xc] sm:$0xf]
        %v630 = vperm.slane %v496, 6
        %v635 = vunpack.c.l.b16 %v626
        %v636 = vunpack.c.l.b16 %v627
        %v637 = vunpack.c.l.b16 %v628
        %v638 = vunpack.c.l.b16 %v629
        %v639 = vpack.c.b16 %v636, %v635
        %v640 = vpack.c.b16 %v638, %v637
        %v644 = vsel %vm498, %v625, 0
        %646 = vmatpush.bf16.msra.mxu0 0
        %647 = vmatpush.bf16.msra.mxu0 0
        %648 = vmatpush.bf16.msra.mxu0 0
        %649 = vmatpush.bf16.msra.mxu0 0
        %650 = vmatpush.bf16.msra.mxu0 0
        %651 = vmatpush.bf16.msra.mxu0 0
        %652 = vmatpush.bf16.msra.mxu0 %v640
        %653 = vmatpush.bf16.msra.mxu0 %v639
        %654 = vmatmul.bf16.gmra.mxu0 %v644
        %v655 = vpop.f32.mrf.mxu0
        %v656 = vadd.f32 %v630, %v655
        %v657 = vpop.f32.mrf.mxu0
        %v658 = vadd.f32 %v630, %v657
        %659 = vdwg.mxu0
        %v660 = vpack.c.bf16 %v658, %v656
        %v661 = vld [vmem:[%s469] sm:$0xf]
        %v662 = vld [vmem:[%s469 + $0x4] sm:$0xf]
        %v663 = vld [vmem:[%s469 + $0x8] sm:$0xf]
        %v664 = vld [vmem:[%s469 + $0xc] sm:$0xf]
        %v665 = vperm.slane %v496, 7
        %v670 = vunpack.c.l.b16 %v661
        %v671 = vunpack.c.l.b16 %v662
        %v672 = vunpack.c.l.b16 %v663
        %v673 = vunpack.c.l.b16 %v664
        %v674 = vpack.c.b16 %v671, %v670
        %v675 = vpack.c.b16 %v673, %v672
        %v679 = vsel %vm498, %v660, 0
        %681 = vmatpush.bf16.msra.mxu0 0
        %682 = vmatpush.bf16.msra.mxu0 0
        %683 = vmatpush.bf16.msra.mxu0 0
        %684 = vmatpush.bf16.msra.mxu0 0
        %685 = vmatpush.bf16.msra.mxu0 0
        %686 = vmatpush.bf16.msra.mxu0 0
        %687 = vmatpush.bf16.msra.mxu0 %v675
        %688 = vmatpush.bf16.msra.mxu0 %v674
        %689 = vmatmul.bf16.gmra.mxu0 %v679
        %v690 = vpop.f32.mrf.mxu0
        %v691 = vadd.f32 %v665, %v690
        %v692 = vpop.f32.mrf.mxu0
        %v693 = vadd.f32 %v665, %v692
        %694 = vdwg.mxu0
        %v695 = vpack.c.bf16 %v691, %v691
        %v696 = vpack.c.bf16 %v693, %v693
        %v698 = vunpack.c.l.b16 %v695
        %v699 = vpack.c.b16 %v698, %v698
        %700 = vrot.lane.b32.xlu0 %v699, 96
        %v701 = vpop.permute.xlu0 %700
        %vm702 = vcmask 64512
        %v704 = vsel %vm702, %v695, 0
        %v707 = vsel %vm702, %v701, 0
        %709 = vmatpush.bf16.xpose.msra.mxu0 0
        %710 = vmatpush.bf16.xpose.msra.mxu0 0
        %711 = vmatpush.bf16.xpose.msra.mxu0 0
        %712 = vmatpush.bf16.xpose.msra.mxu0 0
        %713 = vmatpush.bf16.xpose.msra.mxu0 0
        %714 = vmatpush.bf16.xpose.msra.mxu0 0
        %715 = vmatpush.bf16.xpose.msra.mxu0 0
        %716 = vmatpush.bf16.xpose.msra.mxu0 %v707
        %717 = vmatmul.bf16.gmra.mxu0 %v704
        %v718 = vpop.f32.mrf.mxu0
        %v719 = vadd.f32 0.0, %v718
        %v720 = vpop.f32.mrf.mxu0
        %721 = vdwg.mxu0
        %v723 = vunpack.c.l.b16 %v696
        %v724 = vpack.c.b16 %v723, %v723
        %725 = vrot.lane.b32.xlu0 %v724, 96
        %v726 = vpop.permute.xlu0 %725
        %v728 = vsel %vm702, %v696, 0
        %v731 = vsel %vm702, %v726, 0
        %733 = vmatpush.bf16.xpose.msra.mxu0 0
        %734 = vmatpush.bf16.xpose.msra.mxu0 0
        %735 = vmatpush.bf16.xpose.msra.mxu0 0
        %736 = vmatpush.bf16.xpose.msra.mxu0 0
        %737 = vmatpush.bf16.xpose.msra.mxu0 0
        %738 = vmatpush.bf16.xpose.msra.mxu0 0
        %739 = vmatpush.bf16.xpose.msra.mxu0 0
        %740 = vmatpush.bf16.xpose.msra.mxu0 %v731
        %741 = vmatmul.bf16.gmra.mxu0 %v728
        %v742 = vpop.f32.mrf.mxu0
        %v743 = vadd.f32 0.0, %v742
        %v744 = vpop.f32.mrf.mxu0
        %745 = vdwg.mxu0
        %v746 = vsel %vm702, %v719, -inf
        %747 = vmax.xlane.f32.xlu0 %v746
        %v748 = vpop.xlane.xlu0 %747
        %v749 = vsel %vm702, %v743, -inf
        %750 = vmax.xlane.f32.xlu0 %v749
        %v751 = vpop.xlane.xlu0 %750
        %v752 = vsub.f32 %v719, %v748
        %v753 = vsub.f32 %v743, %v751
        %v754 = vmul.f32 %v752, 1.442695
        %v755 = vpow.pop %v754
        %v756 = vmul.f32 %v753, 1.442695
        %v757 = vpow.pop %v756
        %v758 = vsel %vm702, %v755, 0.0
        %759 = vadd.xlane.f32.xlu0 %v758
        %v760 = vpop.xlane.xlu0 %759
        %v761 = vsel %vm702, %v757, 0.0
        %762 = vadd.xlane.f32.xlu0 %v761
        %v763 = vpop.xlane.xlu0 %762
        %v764 = vrcp.pop %v760
        %v765 = vrcp.pop %v763
        %v766 = vmul.f32 %v755, %v764
        %v767 = vmul.f32 %v757, %v765
        %v768 = vpack.c.bf16 %v766, %v766
        %v769 = vpack.c.bf16 %v767, %v767
        %770 = vrot.lane.b32.xlu0 %v699, 64
        %v771 = vpop.permute.xlu0 %770
        %v773 = vsel %vm702, %v768, 0
        %vm775 = vcmask 1043456
        %v777 = vsel %vm775, %v771, 0
        %779 = vmatpush.bf16.msra.mxu0 0
        %780 = vmatpush.bf16.msra.mxu0 0
        %781 = vmatpush.bf16.msra.mxu0 0
        %782 = vmatpush.bf16.msra.mxu0 0
        %783 = vmatpush.bf16.msra.mxu0 0
        %784 = vmatpush.bf16.msra.mxu0 0
        %785 = vmatpush.bf16.msra.mxu0 0
        %786 = vmatpush.bf16.msra.mxu0 %v777
        %787 = vmatmul.bf16.gmra.mxu0 %v773
        %v788 = vpop.f32.mrf.mxu0
        %v789 = vadd.f32 0.0, %v788
        %v790 = vpop.f32.mrf.mxu0
        %791 = vdwg.mxu0
        %792 = vrot.lane.b32.xlu0 %v724, 64
        %v793 = vpop.permute.xlu0 %792
        %v795 = vsel %vm702, %v769, 0
        %v798 = vsel %vm775, %v793, 0
        %800 = vmatpush.bf16.msra.mxu0 0
        %801 = vmatpush.bf16.msra.mxu0 0
        %802 = vmatpush.bf16.msra.mxu0 0
        %803 = vmatpush.bf16.msra.mxu0 0
        %804 = vmatpush.bf16.msra.mxu0 0
        %805 = vmatpush.bf16.msra.mxu0 0
        %806 = vmatpush.bf16.msra.mxu0 0
        %807 = vmatpush.bf16.msra.mxu0 %v798
        %808 = vmatmul.bf16.gmra.mxu0 %v795
        %v809 = vpop.f32.mrf.mxu0
        %v810 = vadd.f32 0.0, %v809
        %v811 = vpop.f32.mrf.mxu0
        %812 = vdwg.mxu0
        %v813 = vpack.c.bf16 %v810, %v789
        %v814 = vld [vmem:[%s474] sm:$0xf]
        %v816 = vsel %vm702, %v813, 0
        %v819 = vsel %vm775, %v814, 0
        %821 = vmatpush.bf16.msra.mxu0 0
        %822 = vmatpush.bf16.msra.mxu0 0
        %823 = vmatpush.bf16.msra.mxu0 0
        %824 = vmatpush.bf16.msra.mxu0 0
        %825 = vmatpush.bf16.msra.mxu0 0
        %826 = vmatpush.bf16.msra.mxu0 0
        %827 = vmatpush.bf16.msra.mxu0 0
        %828 = vmatpush.bf16.msra.mxu0 %v819
        %829 = vmatmul.bf16.gmra.mxu0 %v816
        %v830 = vpop.f32.mrf.mxu0
        %v831 = vadd.f32 0.0, %v830
        %v832 = vpop.f32.mrf.mxu0
        %v833 = vadd.f32 0.0, %v832
        %834 = vdwg.mxu0
        %v835 = vperm.slane %v497, 0
        %v836 = vadd.f32 %v835, %v831
        %v837 = vadd.f32 %v835, %v833
        %838 = vrot.lane.b32.xlu0 %v699, 120
        %v839 = vpop.permute.xlu0 %838
        %840 = vrot.lane.b32.xlu0 %v699, 88
        %v841 = vpop.permute.xlu0 %840
        %v843 = vsel %vm702, %v839, 0
        %v846 = vsel %vm702, %v841, 0
        %848 = vmatpush.bf16.xpose.msra.mxu0 0
        %849 = vmatpush.bf16.xpose.msra.mxu0 0
        %850 = vmatpush.bf16.xpose.msra.mxu0 0
        %851 = vmatpush.bf16.xpose.msra.mxu0 0
        %852 = vmatpush.bf16.xpose.msra.mxu0 0
        %853 = vmatpush.bf16.xpose.msra.mxu0 0
        %854 = vmatpush.bf16.xpose.msra.mxu0 0
        %855 = vmatpush.bf16.xpose.msra.mxu0 %v846
        %856 = vmatmul.bf16.gmra.mxu0 %v843
        %v857 = vpop.f32.mrf.mxu0
        %v858 = vadd.f32 0.0, %v857
        %v859 = vpop.f32.mrf.mxu0
        %860 = vdwg.mxu0
        %861 = vrot.lane.b32.xlu0 %v724, 120
        %v862 = vpop.permute.xlu0 %861
        %863 = vrot.lane.b32.xlu0 %v724, 88
        %v864 = vpop.permute.xlu0 %863
        %v866 = vsel %vm702, %v862, 0
        %v869 = vsel %vm702, %v864, 0
        %871 = vmatpush.bf16.xpose.msra.mxu0 0
        %872 = vmatpush.bf16.xpose.msra.mxu0 0
        %873 = vmatpush.bf16.xpose.msra.mxu0 0
        %874 = vmatpush.bf16.xpose.msra.mxu0 0
        %875 = vmatpush.bf16.xpose.msra.mxu0 0
        %876 = vmatpush.bf16.xpose.msra.mxu0 0
        %877 = vmatpush.bf16.xpose.msra.mxu0 0
        %878 = vmatpush.bf16.xpose.msra.mxu0 %v869
        %879 = vmatmul.bf16.gmra.mxu0 %v866
        %v880 = vpop.f32.mrf.mxu0
        %v881 = vadd.f32 0.0, %v880
        %v882 = vpop.f32.mrf.mxu0
        %883 = vdwg.mxu0
        %v884 = vsel %vm702, %v858, -inf
        %885 = vmax.xlane.f32.xlu0 %v884
        %v886 = vpop.xlane.xlu0 %885
        %v887 = vsel %vm702, %v881, -inf
        %888 = vmax.xlane.f32.xlu0 %v887
        %v889 = vpop.xlane.xlu0 %888
        %v890 = vsub.f32 %v858, %v886
        %v891 = vsub.f32 %v881, %v889
        %v892 = vmul.f32 %v890, 1.442695
        %v893 = vpow.pop %v892
        %v894 = vmul.f32 %v891, 1.442695
        %v895 = vpow.pop %v894
        %v896 = vsel %vm702, %v893, 0.0
        %897 = vadd.xlane.f32.xlu0 %v896
        %v898 = vpop.xlane.xlu0 %897
        %v899 = vsel %vm702, %v895, 0.0
        %900 = vadd.xlane.f32.xlu0 %v899
        %v901 = vpop.xlane.xlu0 %900
        %v902 = vrcp.pop %v898
        %v903 = vrcp.pop %v901
        %v904 = vmul.f32 %v893, %v902
        %v905 = vmul.f32 %v895, %v903
        %v906 = vpack.c.bf16 %v904, %v904
        %v907 = vpack.c.bf16 %v905, %v905
        %908 = vrot.lane.b32.xlu0 %v699, 56
        %v909 = vpop.permute.xlu0 %908
        %v911 = vsel %vm702, %v906, 0
        %v914 = vsel %vm775, %v909, 0
        %916 = vmatpush.bf16.msra.mxu0 0
        %917 = vmatpush.bf16.msra.mxu0 0
        %918 = vmatpush.bf16.msra.mxu0 0
        %919 = vmatpush.bf16.msra.mxu0 0
        %920 = vmatpush.bf16.msra.mxu0 0
        %921 = vmatpush.bf16.msra.mxu0 0
        %922 = vmatpush.bf16.msra.mxu0 0
        %923 = vmatpush.bf16.msra.mxu0 %v914
        %924 = vmatmul.bf16.gmra.mxu0 %v911
        %v925 = vpop.f32.mrf.mxu0
        %v926 = vadd.f32 0.0, %v925
        %v927 = vpop.f32.mrf.mxu0
        %928 = vdwg.mxu0
        %929 = vrot.lane.b32.xlu0 %v724, 56
        %v930 = vpop.permute.xlu0 %929
        %v932 = vsel %vm702, %v907, 0
        %v935 = vsel %vm775, %v930, 0
        %937 = vmatpush.bf16.msra.mxu0 0
        %938 = vmatpush.bf16.msra.mxu0 0
        %939 = vmatpush.bf16.msra.mxu0 0
        %940 = vmatpush.bf16.msra.mxu0 0
        %941 = vmatpush.bf16.msra.mxu0 0
        %942 = vmatpush.bf16.msra.mxu0 0
        %943 = vmatpush.bf16.msra.mxu0 0
        %944 = vmatpush.bf16.msra.mxu0 %v935
        %945 = vmatmul.bf16.gmra.mxu0 %v932
        %v946 = vpop.f32.mrf.mxu0
        %v947 = vadd.f32 0.0, %v946
        %v948 = vpop.f32.mrf.mxu0
        %949 = vdwg.mxu0
        %v950 = vpack.c.bf16 %v947, %v926
        %s951 = scalar_lea.vmem %s474, 4
        %v952 = vld [vmem:[%s951] sm:$0xf]
        %v954 = vsel %vm702, %v950, 0
        %v957 = vsel %vm775, %v952, 0
        %959 = vmatpush.bf16.msra.mxu0 0
        %960 = vmatpush.bf16.msra.mxu0 0
        %961 = vmatpush.bf16.msra.mxu0 0
        %962 = vmatpush.bf16.msra.mxu0 0
        %963 = vmatpush.bf16.msra.mxu0 0
        %964 = vmatpush.bf16.msra.mxu0 0
        %965 = vmatpush.bf16.msra.mxu0 0
        %966 = vmatpush.bf16.msra.mxu0 %v957
        %967 = vmatmul.bf16.gmra.mxu0 %v954
        %v968 = vpop.f32.mrf.mxu0
        %v969 = vadd.f32 0.0, %v968
        %v970 = vpop.f32.mrf.mxu0
        %v971 = vadd.f32 0.0, %v970
        %972 = vdwg.mxu0
        %v973 = vadd.f32 %v836, %v969
        %v974 = vadd.f32 %v837, %v971
        %975 = vrot.lane.b32.xlu0 %v699, 112
        %v976 = vpop.permute.xlu0 %975
        %977 = vrot.lane.b32.xlu0 %v699, 80
        %v978 = vpop.permute.xlu0 %977
        %v980 = vsel %vm702, %v976, 0
        %v983 = vsel %vm702, %v978, 0
        %985 = vmatpush.bf16.xpose.msra.mxu0 0
        %986 = vmatpush.bf16.xpose.msra.mxu0 0
        %987 = vmatpush.bf16.xpose.msra.mxu0 0
        %988 = vmatpush.bf16.xpose.msra.mxu0 0
        %989 = vmatpush.bf16.xpose.msra.mxu0 0
        %990 = vmatpush.bf16.xpose.msra.mxu0 0
        %991 = vmatpush.bf16.xpose.msra.mxu0 0
        %992 = vmatpush.bf16.xpose.msra.mxu0 %v983
        %993 = vmatmul.bf16.gmra.mxu0 %v980
        %v994 = vpop.f32.mrf.mxu0
        %v995 = vadd.f32 0.0, %v994
        %v996 = vpop.f32.mrf.mxu0
        %997 = vdwg.mxu0
        %998 = vrot.lane.b32.xlu0 %v724, 112
        %v999 = vpop.permute.xlu0 %998
        %1000 = vrot.lane.b32.xlu0 %v724, 80
        %v1001 = vpop.permute.xlu0 %1000
        %v1003 = vsel %vm702, %v999, 0
        %v1006 = vsel %vm702, %v1001, 0
        %1008 = vmatpush.bf16.xpose.msra.mxu0 0
        %1009 = vmatpush.bf16.xpose.msra.mxu0 0
        %1010 = vmatpush.bf16.xpose.msra.mxu0 0
        %1011 = vmatpush.bf16.xpose.msra.mxu0 0
        %1012 = vmatpush.bf16.xpose.msra.mxu0 0
        %1013 = vmatpush.bf16.xpose.msra.mxu0 0
        %1014 = vmatpush.bf16.xpose.msra.mxu0 0
        %1015 = vmatpush.bf16.xpose.msra.mxu0 %v1006
        %1016 = vmatmul.bf16.gmra.mxu0 %v1003
        %v1017 = vpop.f32.mrf.mxu0
        %v1018 = vadd.f32 0.0, %v1017
        %v1019 = vpop.f32.mrf.mxu0
        %1020 = vdwg.mxu0
        %v1021 = vsel %vm702, %v995, -inf
        %1022 = vmax.xlane.f32.xlu0 %v1021
        %v1023 = vpop.xlane.xlu0 %1022
        %v1024 = vsel %vm702, %v1018, -inf
        %1025 = vmax.xlane.f32.xlu0 %v1024
        %v1026 = vpop.xlane.xlu0 %1025
        %v1027 = vsub.f32 %v995, %v1023
        %v1028 = vsub.f32 %v1018, %v1026
        %v1029 = vmul.f32 %v1027, 1.442695
        %v1030 = vpow.pop %v1029
        %v1031 = vmul.f32 %v1028, 1.442695
        %v1032 = vpow.pop %v1031
        %v1033 = vsel %vm702, %v1030, 0.0
        %1034 = vadd.xlane.f32.xlu0 %v1033
        %v1035 = vpop.xlane.xlu0 %1034
        %v1036 = vsel %vm702, %v1032, 0.0
        %1037 = vadd.xlane.f32.xlu0 %v1036
        %v1038 = vpop.xlane.xlu0 %1037
        %v1039 = vrcp.pop %v1035
        %v1040 = vrcp.pop %v1038
        %v1041 = vmul.f32 %v1030, %v1039
        %v1042 = vmul.f32 %v1032, %v1040
        %v1043 = vpack.c.bf16 %v1041, %v1041
        %v1044 = vpack.c.bf16 %v1042, %v1042
        %1045 = vrot.lane.b32.xlu0 %v699, 48
        %v1046 = vpop.permute.xlu0 %1045
        %v1048 = vsel %vm702, %v1043, 0
        %v1051 = vsel %vm775, %v1046, 0
        %1053 = vmatpush.bf16.msra.mxu0 0
        %1054 = vmatpush.bf16.msra.mxu0 0
        %1055 = vmatpush.bf16.msra.mxu0 0
        %1056 = vmatpush.bf16.msra.mxu0 0
        %1057 = vmatpush.bf16.msra.mxu0 0
        %1058 = vmatpush.bf16.msra.mxu0 0
        %1059 = vmatpush.bf16.msra.mxu0 0
        %1060 = vmatpush.bf16.msra.mxu0 %v1051
        %1061 = vmatmul.bf16.gmra.mxu0 %v1048
        %v1062 = vpop.f32.mrf.mxu0
        %v1063 = vadd.f32 0.0, %v1062
        %v1064 = vpop.f32.mrf.mxu0
        %1065 = vdwg.mxu0
        %1066 = vrot.lane.b32.xlu0 %v724, 48
        %v1067 = vpop.permute.xlu0 %1066
        %v1069 = vsel %vm702, %v1044, 0
        %v1072 = vsel %vm775, %v1067, 0
        %1074 = vmatpush.bf16.msra.mxu0 0
        %1075 = vmatpush.bf16.msra.mxu0 0
        %1076 = vmatpush.bf16.msra.mxu0 0
        %1077 = vmatpush.bf16.msra.mxu0 0
        %1078 = vmatpush.bf16.msra.mxu0 0
        %1079 = vmatpush.bf16.msra.mxu0 0
        %1080 = vmatpush.bf16.msra.mxu0 0
        %1081 = vmatpush.bf16.msra.mxu0 %v1072
        %1082 = vmatmul.bf16.gmra.mxu0 %v1069
        %v1083 = vpop.f32.mrf.mxu0
        %v1084 = vadd.f32 0.0, %v1083
        %v1085 = vpop.f32.mrf.mxu0
        %1086 = vdwg.mxu0
        %v1087 = vpack.c.bf16 %v1084, %v1063
        %s1088 = scalar_lea.vmem %s474, 8
        %v1089 = vld [vmem:[%s1088] sm:$0xf]
        %v1091 = vsel %vm702, %v1087, 0
        %v1094 = vsel %vm775, %v1089, 0
        %1096 = vmatpush.bf16.msra.mxu0 0
        %1097 = vmatpush.bf16.msra.mxu0 0
        %1098 = vmatpush.bf16.msra.mxu0 0
        %1099 = vmatpush.bf16.msra.mxu0 0
        %1100 = vmatpush.bf16.msra.mxu0 0
        %1101 = vmatpush.bf16.msra.mxu0 0
        %1102 = vmatpush.bf16.msra.mxu0 0
        %1103 = vmatpush.bf16.msra.mxu0 %v1094
        %1104 = vmatmul.bf16.gmra.mxu0 %v1091
        %v1105 = vpop.f32.mrf.mxu0
        %v1106 = vadd.f32 0.0, %v1105
        %v1107 = vpop.f32.mrf.mxu0
        %v1108 = vadd.f32 0.0, %v1107
        %1109 = vdwg.mxu0
        %v1110 = vadd.f32 %v973, %v1106
        %v1111 = vadd.f32 %v974, %v1108
        %1112 = vrot.lane.b32.xlu0 %v699, 104
        %v1113 = vpop.permute.xlu0 %1112
        %1114 = vrot.lane.b32.xlu0 %v699, 72
        %v1115 = vpop.permute.xlu0 %1114
        %v1117 = vsel %vm702, %v1113, 0
        %v1120 = vsel %vm702, %v1115, 0
        %1122 = vmatpush.bf16.xpose.msra.mxu0 0
        %1123 = vmatpush.bf16.xpose.msra.mxu0 0
        %1124 = vmatpush.bf16.xpose.msra.mxu0 0
        %1125 = vmatpush.bf16.xpose.msra.mxu0 0
        %1126 = vmatpush.bf16.xpose.msra.mxu0 0
        %1127 = vmatpush.bf16.xpose.msra.mxu0 0
        %1128 = vmatpush.bf16.xpose.msra.mxu0 0
        %1129 = vmatpush.bf16.xpose.msra.mxu0 %v1120
        %1130 = vmatmul.bf16.gmra.mxu0 %v1117
        %v1131 = vpop.f32.mrf.mxu0
        %v1132 = vadd.f32 0.0, %v1131
        %v1133 = vpop.f32.mrf.mxu0
        %1134 = vdwg.mxu0
        %1135 = vrot.lane.b32.xlu0 %v724, 104
        %v1136 = vpop.permute.xlu0 %1135
        %1137 = vrot.lane.b32.xlu0 %v724, 72
        %v1138 = vpop.permute.xlu0 %1137
        %v1140 = vsel %vm702, %v1136, 0
        %v1143 = vsel %vm702, %v1138, 0
        %1145 = vmatpush.bf16.xpose.msra.mxu0 0
        %1146 = vmatpush.bf16.xpose.msra.mxu0 0
        %1147 = vmatpush.bf16.xpose.msra.mxu0 0
        %1148 = vmatpush.bf16.xpose.msra.mxu0 0
        %1149 = vmatpush.bf16.xpose.msra.mxu0 0
        %1150 = vmatpush.bf16.xpose.msra.mxu0 0
        %1151 = vmatpush.bf16.xpose.msra.mxu0 0
        %1152 = vmatpush.bf16.xpose.msra.mxu0 %v1143
        %1153 = vmatmul.bf16.gmra.mxu0 %v1140
        %v1154 = vpop.f32.mrf.mxu0
        %v1155 = vadd.f32 0.0, %v1154
        %v1156 = vpop.f32.mrf.mxu0
        %1157 = vdwg.mxu0
        %v1158 = vsel %vm702, %v1132, -inf
        %1159 = vmax.xlane.f32.xlu0 %v1158
        %v1160 = vpop.xlane.xlu0 %1159
        %v1161 = vsel %vm702, %v1155, -inf
        %1162 = vmax.xlane.f32.xlu0 %v1161
        %v1163 = vpop.xlane.xlu0 %1162
        %v1164 = vsub.f32 %v1132, %v1160
        %v1165 = vsub.f32 %v1155, %v1163
        %v1166 = vmul.f32 %v1164, 1.442695
        %v1167 = vpow.pop %v1166
        %v1168 = vmul.f32 %v1165, 1.442695
        %v1169 = vpow.pop %v1168
        %v1170 = vsel %vm702, %v1167, 0.0
        %1171 = vadd.xlane.f32.xlu0 %v1170
        %v1172 = vpop.xlane.xlu0 %1171
        %v1173 = vsel %vm702, %v1169, 0.0
        %1174 = vadd.xlane.f32.xlu0 %v1173
        %v1175 = vpop.xlane.xlu0 %1174
        %v1176 = vrcp.pop %v1172
        %v1177 = vrcp.pop %v1175
        %v1178 = vmul.f32 %v1167, %v1176
        %v1179 = vmul.f32 %v1169, %v1177
        %v1180 = vpack.c.bf16 %v1178, %v1178
        %v1181 = vpack.c.bf16 %v1179, %v1179
        %1182 = vrot.lane.b32.xlu0 %v699, 40
        %v1183 = vpop.permute.xlu0 %1182
        %v1185 = vsel %vm702, %v1180, 0
        %v1188 = vsel %vm775, %v1183, 0
        %1190 = vmatpush.bf16.msra.mxu0 0
        %1191 = vmatpush.bf16.msra.mxu0 0
        %1192 = vmatpush.bf16.msra.mxu0 0
        %1193 = vmatpush.bf16.msra.mxu0 0
        %1194 = vmatpush.bf16.msra.mxu0 0
        %1195 = vmatpush.bf16.msra.mxu0 0
        %1196 = vmatpush.bf16.msra.mxu0 0
        %1197 = vmatpush.bf16.msra.mxu0 %v1188
        %1198 = vmatmul.bf16.gmra.mxu0 %v1185
        %v1199 = vpop.f32.mrf.mxu0
        %v1200 = vadd.f32 0.0, %v1199
        %v1201 = vpop.f32.mrf.mxu0
        %1202 = vdwg.mxu0
        %1203 = vrot.lane.b32.xlu0 %v724, 40
        %v1204 = vpop.permute.xlu0 %1203
        %v1206 = vsel %vm702, %v1181, 0
        %v1209 = vsel %vm775, %v1204, 0
        %1211 = vmatpush.bf16.msra.mxu0 0
        %1212 = vmatpush.bf16.msra.mxu0 0
        %1213 = vmatpush.bf16.msra.mxu0 0
        %1214 = vmatpush.bf16.msra.mxu0 0
        %1215 = vmatpush.bf16.msra.mxu0 0
        %1216 = vmatpush.bf16.msra.mxu0 0
        %1217 = vmatpush.bf16.msra.mxu0 0
        %1218 = vmatpush.bf16.msra.mxu0 %v1209
        %1219 = vmatmul.bf16.gmra.mxu0 %v1206
        %v1220 = vpop.f32.mrf.mxu0
        %v1221 = vadd.f32 0.0, %v1220
        %v1222 = vpop.f32.mrf.mxu0
        %1223 = vdwg.mxu0
        %v1224 = vpack.c.bf16 %v1221, %v1200
        %s1225 = scalar_lea.vmem %s474, 12
        %v1226 = vld [vmem:[%s1225] sm:$0xf]
        %v1228 = vsel %vm702, %v1224, 0
        %v1231 = vsel %vm775, %v1226, 0
        %1233 = vmatpush.bf16.msra.mxu0 0
        %1234 = vmatpush.bf16.msra.mxu0 0
        %1235 = vmatpush.bf16.msra.mxu0 0
        %1236 = vmatpush.bf16.msra.mxu0 0
        %1237 = vmatpush.bf16.msra.mxu0 0
        %1238 = vmatpush.bf16.msra.mxu0 0
        %1239 = vmatpush.bf16.msra.mxu0 0
        %1240 = vmatpush.bf16.msra.mxu0 %v1231
        %1241 = vmatmul.bf16.gmra.mxu0 %v1228
        %v1242 = vpop.f32.mrf.mxu0
        %v1243 = vadd.f32 0.0, %v1242
        %v1244 = vpop.f32.mrf.mxu0
        %v1245 = vadd.f32 0.0, %v1244
        %1246 = vdwg.mxu0
        %v1247 = vadd.f32 %v1110, %v1243
        %v1248 = vadd.f32 %v1111, %v1245
        %v1249 = vadd.f32 %v1247, %v494
        %v1250 = vadd.f32 %v1248, %v495
        %v1251 = vsel %vm498, %v1249, 0.0
        %1252 = vadd.xlane.f32.xlu0 %v1251
        %v1253 = vpop.xlane.xlu0 %1252
        %v1254 = vsel %vm498, %v1250, 0.0
        %1255 = vadd.xlane.f32.xlu0 %v1254
        %v1256 = vpop.xlane.xlu0 %1255
        %v1257 = vmul.f32 %v1253, %v511
        %v1258 = vmul.f32 %v1256, %v511
        %v1259 = vsub.f32 %v1249, %v1257
        %v1260 = vsub.f32 %v1250, %v1258
        %v1261 = vmul.f32 %v1259, %v1259
        %v1262 = vmul.f32 %v1260, %v1260
        %v1263 = vsel %vm498, %v1261, 0.0
        %1264 = vadd.xlane.f32.xlu0 %v1263
        %v1265 = vpop.xlane.xlu0 %1264
        %v1266 = vsel %vm498, %v1262, 0.0
        %1267 = vadd.xlane.f32.xlu0 %v1266
        %v1268 = vpop.xlane.xlu0 %1267
        %v1269 = vmul.f32 %v1265, %v511
        %v1270 = vmul.f32 %v1268, %v511
        %v1271 = vadd.f32 %v1269, 1e-06
        %v1272 = vadd.f32 %v1270, 1e-06
        %v1273 = vrsqrt.pop %v1271
        %v1274 = vmul.f32 %v1273, %v1271
        %v1275 = vmul.f32 %v1274, %v1273
        %v1276 = vmul.f32 0.5, %v1275
        %v1277 = vsub.f32 1.5, %v1276
        %v1278 = vmul.f32 %v1273, %v1277
        %vm1279 = vweird.f32 %v1271
        %vm1280 = vweird.f32 %v1273
        %vm1281 = vmor %vm1279, %vm1280
        %v1282 = vsel %vm1281, %v1273, %v1278
        %v1283 = vrsqrt.pop %v1272
        %v1284 = vmul.f32 %v1283, %v1272
        %v1285 = vmul.f32 %v1284, %v1283
        %v1286 = vmul.f32 0.5, %v1285
        %v1287 = vsub.f32 1.5, %v1286
        %v1288 = vmul.f32 %v1283, %v1287
        %vm1289 = vweird.f32 %v1272
        %vm1290 = vweird.f32 %v1283
        %vm1291 = vmor %vm1289, %vm1290
        %v1292 = vsel %vm1291, %v1283, %v1288
        %v1293 = vmul.f32 %v1259, %v1282
        %v1294 = vmul.f32 %v1260, %v1292
        %v1295 = vperm.slane %v497, 1
        %v1296 = vmul.f32 %v1293, %v1295
        %v1297 = vmul.f32 %v1294, %v1295
        %v1298 = vperm.slane %v497, 2
        %v1299 = vadd.f32 %v1296, %v1298
        %v1300 = vadd.f32 %v1297, %v1298
        %v1301 = vpack.c.bf16 %v1300, %v1299
        %v1302 = vld [vmem:[%s388] sm:$0xf]
        %v1303 = vld [vmem:[%s388 + $0x4] sm:$0xf]
        %v1304 = vld [vmem:[%s388 + $0x8] sm:$0xf]
        %v1305 = vld [vmem:[%s388 + $0xc] sm:$0xf]
        %v1306 = vperm.slane %v497, 3
        %v1311 = vunpack.c.l.b16 %v1302
        %v1312 = vunpack.c.l.b16 %v1303
        %v1313 = vunpack.c.l.b16 %v1304
        %v1314 = vunpack.c.l.b16 %v1305
        %v1315 = vpack.c.b16 %v1312, %v1311
        %v1316 = vpack.c.b16 %v1314, %v1313
        %v1320 = vsel %vm498, %v1301, 0
        %1322 = vmatpush.bf16.msra.mxu0 0
        %1323 = vmatpush.bf16.msra.mxu0 0
        %1324 = vmatpush.bf16.msra.mxu0 0
        %1325 = vmatpush.bf16.msra.mxu0 0
        %1326 = vmatpush.bf16.msra.mxu0 0
        %1327 = vmatpush.bf16.msra.mxu0 0
        %1328 = vmatpush.bf16.msra.mxu0 %v1316
        %1329 = vmatpush.bf16.msra.mxu0 %v1315
        %1330 = vmatmul.bf16.gmra.mxu0 %v1320
        %v1331 = vpop.f32.mrf.mxu0
        %v1332 = vadd.f32 %v1306, %v1331
        %v1333 = vpop.f32.mrf.mxu0
        %v1334 = vadd.f32 %v1306, %v1333
        %1335 = vdwg.mxu0
        %v1336 = vmul.f32 %v1332, 0.5
        %v1337 = vmul.f32 %v1334, 0.5
        %v1338 = vmul.f32 %v1332, 0.70710677
        %v1339 = vmul.f32 %v1334, 0.70710677
        %v1340 = vmul.f32 %v1338, %v1338
        %v1341 = vmin.f32 16.0, %v1340
        %v1342 = vmul.f32 %v1341, 2.1237322e-06
        %v1343 = vadd.f32 %v1342, 0.00028619796
        %v1344 = vmul.f32 %v1341, %v1343
        %v1345 = vadd.f32 %v1344, 0.0036580483
        %v1346 = vmul.f32 %v1341, %v1345
        %v1347 = vadd.f32 %v1346, 0.05243302
        %v1348 = vmul.f32 %v1341, %v1347
        %v1349 = vadd.f32 %v1348, 0.18741608
        %v1350 = vmul.f32 %v1341, %v1349
        %v1351 = vadd.f32 %v1350, 1.1283791
        %v1352 = vmul.f32 %v1338, %v1351
        %v1353 = vmul.f32 %v1341, 3.8918573e-05
        %v1354 = vadd.f32 %v1353, 0.001143296
        %v1355 = vmul.f32 %v1341, %v1354
        %v1356 = vadd.f32 %v1355, 0.014752088
        %v1357 = vmul.f32 %v1341, %v1356
        %v1358 = vadd.f32 %v1357, 0.112945676
        %v1359 = vmul.f32 %v1341, %v1358
        %v1360 = vadd.f32 %v1359, 0.4994258
        %v1361 = vmul.f32 %v1341, %v1360
        %v1362 = vadd.f32 %v1361, 1.0
        %v1363 = vrcp.pop %v1362
        %v1364 = vmul.f32 %v1362, %v1363
        %v1365 = vsub.f32 1.0, %v1364
        %v1366 = vmul.f32 %v1363, %v1365
        %v1367 = vadd.f32 %v1363, %v1366
        %vm1368 = vweird.f32 %v1362
        %vm1369 = vweird.f32 %v1363
        %vm1370 = vmor %vm1368, %vm1369
        %v1371 = vsel %vm1370, %v1363, %v1367
        %v1372 = vand.u32 2147483647, %v1362
        %vm1373 = vcmp.eq.f32.partialorder %v1372, 8.507059e+37
        %v1374 = vand.u32 %v1362, 2147483648
        %v1375 = vor.u32 1.1754944e-38, %v1374
        %v1376 = vsel %vm1373, %v1375, %v1371
        %v1377 = vmul.f32 %v1352, %v1376
        %v1378 = vmin.f32 %v1377, 1.0
        %v1379 = vmax.f32 %v1378, -1.0
        %v1380 = vmul.f32 %v1339, %v1339
        %v1381 = vmin.f32 16.0, %v1380
        %v1382 = vmul.f32 %v1381, 2.1237322e-06
        %v1383 = vadd.f32 %v1382, 0.00028619796
        %v1384 = vmul.f32 %v1381, %v1383
        %v1385 = vadd.f32 %v1384, 0.0036580483
        %v1386 = vmul.f32 %v1381, %v1385
        %v1387 = vadd.f32 %v1386, 0.05243302
        %v1388 = vmul.f32 %v1381, %v1387
        %v1389 = vadd.f32 %v1388, 0.18741608
        %v1390 = vmul.f32 %v1381, %v1389
        %v1391 = vadd.f32 %v1390, 1.1283791
        %v1392 = vmul.f32 %v1339, %v1391
        %v1393 = vmul.f32 %v1381, 3.8918573e-05
        %v1394 = vadd.f32 %v1393, 0.001143296
        %v1395 = vmul.f32 %v1381, %v1394
        %v1396 = vadd.f32 %v1395, 0.014752088
        %v1397 = vmul.f32 %v1381, %v1396
        %v1398 = vadd.f32 %v1397, 0.112945676
        %v1399 = vmul.f32 %v1381, %v1398
        %v1400 = vadd.f32 %v1399, 0.4994258
        %v1401 = vmul.f32 %v1381, %v1400
        %v1402 = vadd.f32 %v1401, 1.0
        %v1403 = vrcp.pop %v1402
        %v1404 = vmul.f32 %v1402, %v1403
        %v1405 = vsub.f32 1.0, %v1404
        %v1406 = vmul.f32 %v1403, %v1405
        %v1407 = vadd.f32 %v1403, %v1406
        %vm1408 = vweird.f32 %v1402
        %vm1409 = vweird.f32 %v1403
        %vm1410 = vmor %vm1408, %vm1409
        %v1411 = vsel %vm1410, %v1403, %v1407
        %v1412 = vand.u32 2147483647, %v1402
        %vm1413 = vcmp.eq.f32.partialorder %v1412, 8.507059e+37
        %v1414 = vand.u32 %v1402, 2147483648
        %v1415 = vor.u32 1.1754944e-38, %v1414
        %v1416 = vsel %vm1413, %v1415, %v1411
        %v1417 = vmul.f32 %v1392, %v1416
        %v1418 = vmin.f32 %v1417, 1.0
        %v1419 = vmax.f32 %v1418, -1.0
        %v1420 = vadd.f32 %v1379, 1.0
        %v1421 = vadd.f32 %v1419, 1.0
        %v1422 = vmul.f32 %v1336, %v1420
        %v1423 = vmul.f32 %v1337, %v1421
        %v1424 = vpack.c.bf16 %v1423, %v1422
        %v1425 = vld [vmem:[%s479] sm:$0xf]
        %v1426 = vld [vmem:[%s479 + $0x4] sm:$0xf]
        %v1427 = vld [vmem:[%s479 + $0x8] sm:$0xf]
        %v1428 = vld [vmem:[%s479 + $0xc] sm:$0xf]
        %v1429 = vld [vmem:[%s479 + $0x10] sm:$0xf]
        %v1430 = vld [vmem:[%s479 + $0x14] sm:$0xf]
        %v1431 = vld [vmem:[%s479 + $0x18] sm:$0xf]
        %v1432 = vld [vmem:[%s479 + $0x1c] sm:$0xf]
        %v1433 = vperm.slane %v497, 4
        %v1442 = vunpack.c.l.b16 %v1425
        %v1443 = vunpack.c.l.b16 %v1426
        %v1444 = vunpack.c.l.b16 %v1427
        %v1445 = vunpack.c.l.b16 %v1428
        %v1446 = vunpack.c.l.b16 %v1429
        %v1447 = vunpack.c.l.b16 %v1430
        %v1448 = vunpack.c.l.b16 %v1431
        %v1449 = vunpack.c.l.b16 %v1432
        %v1450 = vpack.c.b16 %v1443, %v1442
        %v1451 = vpack.c.b16 %v1445, %v1444
        %v1452 = vpack.c.b16 %v1447, %v1446
        %v1453 = vpack.c.b16 %v1449, %v1448
        %vm1458 = vcmask 523264
        %v1460 = vsel %vm1458, %v1424, 0
        %1462 = vmatpush.bf16.msra.mxu0 0
        %1463 = vmatpush.bf16.msra.mxu0 0
        %1464 = vmatpush.bf16.msra.mxu0 0
        %1465 = vmatpush.bf16.msra.mxu0 0
        %1466 = vmatpush.bf16.msra.mxu0 %v1453
        %1467 = vmatpush.bf16.msra.mxu0 %v1452
        %1468 = vmatpush.bf16.msra.mxu0 %v1451
        %1469 = vmatpush.bf16.msra.mxu0 %v1450
        %1470 = vmatmul.bf16.gmra.mxu0 %v1460
        %v1471 = vpop.f32.mrf.mxu0
        %v1472 = vadd.f32 %v1433, %v1471
        %v1473 = vpop.f32.mrf.mxu0
        %v1474 = vadd.f32 %v1433, %v1473
        %1475 = vdwg.mxu0
        %v1476 = vadd.f32 %v1249, %v1472
        %v1477 = vadd.f32 %v1250, %v1474
        %p1478 = scmp.lt.s32.totalorder %s29, 1
        // Predicated region
        $region65: #{tpu_custom_call.1} parent=55 // pred_check
          %p1479 = pneg %p1478
        $region66: #{tpu_custom_call.1} parent=55 // pred_check_branch
          %1481 = sbr.rel (%p1479) target = $region68
        $region67: #{tpu_custom_call.1} parent=55 // pred_region
          %1482 = vst.msk [vmem:[#allocation2] sm:$0xff] %vm498, %v1476
          %1483 = vst.msk [vmem:[#allocation2 + $0x8] sm:$0xff] %vm498, %v1477
        $region68: #{tpu_custom_call.1} parent=55 // pred_fallthru
          _
        %p1484 = scmp.eq.s32.totalorder %s29, 1
        // Predicated region
        $region69: #{tpu_custom_call.1} parent=55 // pred_check
          %p1485 = pneg %p1484
        $region70: #{tpu_custom_call.1} parent=55 // pred_check_branch
          %1487 = sbr.rel (%p1485) target = $region72
        $region71: #{tpu_custom_call.1} parent=55 // pred_region
          %v1488 = vld [vmem:[%s8] sm:$0x1]
          %v1489 = vld [vmem:[%s8 + $0x1] sm:$0x1]
          %v1490 = vsel %vm498, %v1476, 0.0
          %1491 = vadd.xlane.f32.xlu0 %v1490
          %v1492 = vpop.xlane.xlu0 %1491
          %v1493 = vsel %vm498, %v1477, 0.0
          %1494 = vadd.xlane.f32.xlu0 %v1493
          %v1495 = vpop.xlane.xlu0 %1494
          %v1496 = vmul.f32 %v1492, %v511
          %v1497 = vmul.f32 %v1495, %v511
          %v1498 = vsub.f32 %v1476, %v1496
          %v1499 = vsub.f32 %v1477, %v1497
          %v1500 = vmul.f32 %v1498, %v1498
          %v1501 = vmul.f32 %v1499, %v1499
          %v1502 = vsel %vm498, %v1500, 0.0
          %1503 = vadd.xlane.f32.xlu0 %v1502
          %v1504 = vpop.xlane.xlu0 %1503
          %v1505 = vsel %vm498, %v1501, 0.0
          %1506 = vadd.xlane.f32.xlu0 %v1505
          %v1507 = vpop.xlane.xlu0 %1506
          %v1508 = vmul.f32 %v1504, %v511
          %v1509 = vmul.f32 %v1507, %v511
          %v1510 = vadd.f32 %v1508, 1e-06
          %v1511 = vadd.f32 %v1509, 1e-06
          %v1512 = vrsqrt.pop %v1510
          %v1513 = vmul.f32 %v1512, %v1510
          %v1514 = vmul.f32 %v1513, %v1512
          %v1515 = vmul.f32 0.5, %v1514
          %v1516 = vsub.f32 1.5, %v1515
          %v1517 = vmul.f32 %v1512, %v1516
          %vm1518 = vweird.f32 %v1510
          %vm1519 = vweird.f32 %v1512
          %vm1520 = vmor %vm1518, %vm1519
          %v1521 = vsel %vm1520, %v1512, %v1517
          %v1522 = vrsqrt.pop %v1511
          %v1523 = vmul.f32 %v1522, %v1511
          %v1524 = vmul.f32 %v1523, %v1522
          %v1525 = vmul.f32 0.5, %v1524
          %v1526 = vsub.f32 1.5, %v1525
          %v1527 = vmul.f32 %v1522, %v1526
          %vm1528 = vweird.f32 %v1511
          %vm1529 = vweird.f32 %v1522
          %vm1530 = vmor %vm1528, %vm1529
          %v1531 = vsel %vm1530, %v1522, %v1527
          %v1532 = vmul.f32 %v1498, %v1521
          %v1533 = vmul.f32 %v1499, %v1531
          %v1534 = vperm.slane %v1488, 0
          %v1535 = vmul.f32 %v1532, %v1534
          %v1536 = vmul.f32 %v1533, %v1534
          %v1537 = vperm.slane %v1489, 0
          %v1538 = vadd.f32 %v1535, %v1537
          %v1539 = vadd.f32 %v1536, %v1537
          %1540 = vst.msk [vmem:[#allocation6] sm:$0xff] %vm498, %v1538
          %1541 = vst.msk [vmem:[#allocation6 + $0x8] sm:$0xff] %vm498, %v1539
        $region72: #{tpu_custom_call.1} parent=55 // pred_fallthru
          _
        // Predicated region
        $region73: #{tpu_custom_call.1} parent=55 // pred_check
          %p1542 = pneg %p278
        $region74: #{tpu_custom_call.1} parent=55 // pred_check_branch
          %1544 = sbr.rel (%p1542) target = $region76
        $region75: #{tpu_custom_call.1} parent=55 // pred_region
          %s1545 = smul.u32 2, %s28
          %1547 = vsyncadd [#allocation5], 0
          %s1548 = smul.addr %s1545, 8
          %s1549 = scalar_lea.hbm %s9, %s1548
          %s1550 = sshll.u32 [#allocation6], 4
          %s1551 = int_to_ptr.vmem [resolvable:$true] %s1550
          %s1552 = sshll.u32 %s1549, 4
          %s1553 = int_to_ptr.hbm [resolvable:$true] %s1552
          %1558 = dma.vmem_to_hbm [thread:$0]  %s1551, 256, %s1553, [#allocation5], 128, 128, 8
        $region76: #{tpu_custom_call.1} parent=55 // pred_fallthru
          _
        // Predicated region
        $region77: #{tpu_custom_call.1} parent=55 // pred_check
          %p1559 = pneg %p278
        $region78: #{tpu_custom_call.1} parent=55 // pred_check_branch
          %1561 = sbr.rel (%p1559) target = $region80
        $region79: #{tpu_custom_call.1} parent=55 // pred_region
          %1563 = dma.done [#allocation5], 256
        $region80: #{tpu_custom_call.1} parent=55 // pred_fallthru
          _
      $region56: #{tpu_custom_call.1} parent=5 // pred_fallthru
        _
      %p1564 = scmp.le.s32.totalorder 2, %s19
      // Predicated region
      $region81: #{tpu_custom_call.1} parent=5 // pred_check
        %p1565 = pneg %p1564
      $region82: #{tpu_custom_call.1} parent=5 // pred_check_branch
        %1567 = sbr.rel (%p1565) target = $region84
      $region83: #{tpu_custom_call.1} parent=5 // pred_region
        %s1568 = ssub.s32 %s19, 2
      $region84: #{tpu_custom_call.1} parent=5 // pred_fallthru
        _
    $region6: #{tpu_custom_call.1} parent=1 // loop_footer
      %s23 = sadd.s32 1, %s19
    $region7: #{tpu_custom_call.1} parent=1 // loop_footer_branch
      %18 = sbr.rel target = $region3
    $region8: #{tpu_custom_call.1} parent=1 // loop_exit
      _
    %1569 = vsyncpa [#allocation4], 1
    %s1570 = scalar_lea.sflag [#allocation4], 1
    %1571 = vsyncpa %s1570, 1
    %1572 = vsyncpa [#allocation5], 1
    %s1573 = scalar_lea.sflag [#allocation5], 1
    %1574 = vsyncpa %s1573, 1

</llo_original>
